<compile_context>
chip_gen: v7x
topology: tpu7x:2x2x1
jax: 0.10.0
libtpu: 0.0.40
codegen_flags: <defaults>
</compile_context>

<pallas_src>
import functools

import jax
import jax.numpy as jnp
from jax.experimental import pallas as pl
from jax.experimental.pallas import tpu as pltpu

D_MODEL = 256
_LN_EPS = 1e-5

_PARALLEL_1D = pltpu.CompilerParams(
    dimension_semantics=("parallel",),
    vmem_limit_bytes=32 * 1024 * 1024,
)


def _round_up(x, m):
    return ((x + m - 1) // m) * m


def _row_tile(m):
    # Largest row tile <= 512 (safe for v7x VMEM budget); second-minor dim is
    # always a multiple of 8 (or the full extent for tiny M).
    return min(512, _round_up(max(m, 1), 8))


# ----------------------------------------------------------------------------
# Pallas kernels
# ----------------------------------------------------------------------------
def _linear_kernel(x_ref, w_ref, b_ref, o_ref):
    # y = x @ W + b ; bf16 MXU operands, f32 accumulation, f32 epilogue.
    y = jnp.dot(x_ref[...].astype(jnp.bfloat16), w_ref[...],
                preferred_element_type=jnp.float32)
    o_ref[...] = (y + b_ref[...]).astype(o_ref.dtype)


def linear(x, w_bf16, b):
    """Row-tiled y = x @ W + b. x: (M, K) f32, w_bf16: (K, N) bf16."""
    M, K = x.shape
    N = w_bf16.shape[1]
    TM = _row_tile(M)
    return pl.pallas_call(
        _linear_kernel,
        out_shape=jax.ShapeDtypeStruct((M, N), jnp.float32),
        grid=(pl.cdiv(M, TM),),
        in_specs=[
            pl.BlockSpec((TM, K), lambda i: (i, 0)),
            pl.BlockSpec((K, N), lambda i: (0, 0)),
            pl.BlockSpec((1, N), lambda i: (0, 0)),
        ],
        out_specs=pl.BlockSpec((TM, N), lambda i: (i, 0)),
        compiler_params=_PARALLEL_1D,
    )(x, w_bf16, b.reshape(1, N))


def _attn_kernel(qkv_ref, o_ref, *, H, Dh, scale):
    D = H * Dh
    qkv = qkv_ref[0]                       # (S, 3*D) f32, one batch element
    outs = []
    for h in range(H):                     # static unroll over heads
        q = qkv[:, h * Dh:(h + 1) * Dh].astype(jnp.bfloat16)
        k = qkv[:, D + h * Dh:D + (h + 1) * Dh].astype(jnp.bfloat16)
        v = qkv[:, 2 * D + h * Dh:2 * D + (h + 1) * Dh].astype(jnp.bfloat16)
        # q @ k^T without an explicit transpose: contract the last dims.
        s = jax.lax.dot_general(q, k, (((1,), (1,)), ((), ())),
                                preferred_element_type=jnp.float32) * scale
        m = jnp.max(s, axis=-1, keepdims=True)
        p = jnp.exp(s - m)
        denom = jnp.sum(p, axis=-1, keepdims=True)
        p = p * pl.reciprocal(denom, approx=True)   # divide moved to EUP slot
        outs.append(jnp.dot(p.astype(jnp.bfloat16), v,
                            preferred_element_type=jnp.float32))
    # single lane-dense (S, 256) store
    o_ref[0] = jnp.concatenate(outs, axis=-1).astype(o_ref.dtype)


def self_attention(qkv, B, S, H):
    """qkv: (B*S, 3*D) batch-major -> (B*S, D) attention output."""
    D = D_MODEL
    Dh = D // H
    qkv3 = qkv.reshape(B, S, 3 * D)        # leading-dim split only (free)
    out = pl.pallas_call(
        functools.partial(_attn_kernel, H=H, Dh=Dh, scale=1.0 / (Dh ** 0.5)),
        out_shape=jax.ShapeDtypeStruct((B, S, D), jnp.float32),
        grid=(B,),
        in_specs=[pl.BlockSpec((1, S, 3 * D), lambda b: (b, 0, 0))],
        out_specs=pl.BlockSpec((1, S, D), lambda b: (b, 0, 0)),
        compiler_params=_PARALLEL_1D,
    )(qkv3)
    return out.reshape(B * S, D)


def _post_attn_kernel(a_ref, h_ref, wo_ref, bo_ref, g1_ref, b1_ref,
                      wf1_ref, bf1_ref, wf2_ref, bf2_ref, g2_ref, b2_ref,
                      o_ref):
    def ln(t, g, b):
        mu = jnp.mean(t, axis=-1, keepdims=True)
        var = jnp.mean((t - mu) * (t - mu), axis=-1, keepdims=True)
        return (t - mu) * jax.lax.rsqrt(var + _LN_EPS) * g + b

    h = h_ref[...]
    # out_proj + residual + LN1
    y = jnp.dot(a_ref[...].astype(jnp.bfloat16), wo_ref[...],
                preferred_element_type=jnp.float32) + bo_ref[...]
    # TODO(synk): dropout(p=0.1) on attention / FFN outputs is eval-mode identity.
    h1 = ln(h + y, g1_ref[...], b1_ref[...])
    # FFN: the (TM, dim_feedforward) intermediate stays in VMEM / vregs
    f = jnp.dot(h1.astype(jnp.bfloat16), wf1_ref[...],
                preferred_element_type=jnp.float32) + bf1_ref[...]
    f = jnp.maximum(f, 0.0)
    f2 = jnp.dot(f.astype(jnp.bfloat16), wf2_ref[...],
                 preferred_element_type=jnp.float32) + bf2_ref[...]
    # residual + LN2
    o_ref[...] = ln(h1 + f2, g2_ref[...], b2_ref[...]).astype(o_ref.dtype)


def post_attention_block(attn, h, lp):
    """Fused out_proj -> +res -> LN1 -> FFN(ReLU) -> +res -> LN2, row-tiled."""
    M, D = h.shape
    F = lp["ffn1_w"].shape[1]
    TM = _row_tile(M)
    row = lambda i: (i, 0)
    rep = lambda i: (0, 0)
    return pl.pallas_call(
        _post_attn_kernel,
        out_shape=jax.ShapeDtypeStruct((M, D), jnp.float32),
        grid=(pl.cdiv(M, TM),),
        in_specs=[
            pl.BlockSpec((TM, D), row),     # attention output
            pl.BlockSpec((TM, D), row),     # residual stream h
            pl.BlockSpec((D, D), rep),      # out_proj W (bf16)
            pl.BlockSpec((1, D), rep),      # out_proj b
            pl.BlockSpec((1, D), rep),      # ln1 gamma
            pl.BlockSpec((1, D), rep),      # ln1 beta
            pl.BlockSpec((D, F), rep),      # ffn1 W (bf16)
            pl.BlockSpec((1, F), rep),      # ffn1 b
            pl.BlockSpec((F, D), rep),      # ffn2 W (bf16)
            pl.BlockSpec((1, D), rep),      # ffn2 b
            pl.BlockSpec((1, D), rep),      # ln2 gamma
            pl.BlockSpec((1, D), rep),      # ln2 beta
        ],
        out_specs=pl.BlockSpec((TM, D), row),
        compiler_params=_PARALLEL_1D,
    )(attn, h,
      lp["out_proj_w"].astype(jnp.bfloat16), lp["out_proj_b"].reshape(1, D),
      lp["ln1_g"].reshape(1, D), lp["ln1_b"].reshape(1, D),
      lp["ffn1_w"].astype(jnp.bfloat16), lp["ffn1_b"].reshape(1, F),
      lp["ffn2_w"].astype(jnp.bfloat16), lp["ffn2_b"].reshape(1, D),
      lp["ln2_g"].reshape(1, D), lp["ln2_b"].reshape(1, D))


# ----------------------------------------------------------------------------
# Model (glue in plain JAX, hot paths in Pallas)
# ----------------------------------------------------------------------------
def init_params(key, input_dim, heads_num, dim_feedforward, num_layers, num_classes):
    def dense(k, fan_in, fan_out):
        kw, kb = jax.random.split(k)
        w = jax.random.normal(kw, (fan_in, fan_out), jnp.float32) * 0.02
        b = jax.random.normal(kb, (fan_out,), jnp.float32) * 0.02
        return w, b

    keys = jax.random.split(key, 2 + num_layers)
    params = {}
    params["input_w"], params["input_b"] = dense(keys[0], input_dim, D_MODEL)
    # output_layer exists in __init__ but is not used in forward(); init anyway.
    params["output_w"], params["output_b"] = dense(keys[1], D_MODEL, num_classes)

    layers = []
    for li in range(num_layers):
        lk = jax.random.split(keys[2 + li], 4)
        lp = {}
        # qkv packed projection (stored transposed: (d_model, 3*d_model), cols [q|k|v])
        lp["in_proj_w"], lp["in_proj_b"] = dense(lk[0], D_MODEL, 3 * D_MODEL)
        lp["out_proj_w"], lp["out_proj_b"] = dense(lk[1], D_MODEL, D_MODEL)
        lp["ffn1_w"], lp["ffn1_b"] = dense(lk[2], D_MODEL, dim_feedforward)
        lp["ffn2_w"], lp["ffn2_b"] = dense(lk[3], dim_feedforward, D_MODEL)
        lp["ln1_g"] = jnp.ones((D_MODEL,), jnp.float32)
        lp["ln1_b"] = jnp.zeros((D_MODEL,), jnp.float32)
        lp["ln2_g"] = jnp.ones((D_MODEL,), jnp.float32)
        lp["ln2_b"] = jnp.zeros((D_MODEL,), jnp.float32)
        layers.append(lp)
    params["layers"] = layers
    return params


def trans_audio_forward(params, x, heads_num):
    """x: (S, B, input_dim) seq-first -> (S, B, 256)."""
    S, B, _ = x.shape
    # single layout change into batch-major (B*S, ...) for the whole stack
    xb = jnp.transpose(x, (1, 0, 2)).reshape(B * S, -1)
    h = linear(xb, params["input_w"].astype(jnp.bfloat16), params["input_b"])
    for lp in params["layers"]:
        qkv = linear(h, lp["in_proj_w"].astype(jnp.bfloat16), lp["in_proj_b"])
        attn = self_attention(qkv, B, S, heads_num)
        h = post_attention_block(attn, h, lp)
    return jnp.transpose(h.reshape(B, S, D_MODEL), (1, 0, 2))


# ----------------------------------------------------------------------------
# Pure-JAX reference (same bf16 MXU-operand convention, seq-first layout)
# ----------------------------------------------------------------------------
def reference_forward(params, x, heads_num):
    S, B, _ = x.shape
    H = heads_num
    Dh = D_MODEL // H
    bf = lambda t: t.astype(jnp.bfloat16)

    def ln(h, g, b):
        mu = jnp.mean(h, axis=-1, keepdims=True)
        var = jnp.mean((h - mu) ** 2, axis=-1, keepdims=True)
        return (h - mu) * jax.lax.rsqrt(var + _LN_EPS) * g + b

    def mm(a, w):
        return jnp.dot(bf(a), bf(w), preferred_element_type=jnp.float32)

    h = mm(x.reshape(S * B, -1), params["input_w"]) + params["input_b"]
    for lp in params["layers"]:
        qkv = mm(h, lp["in_proj_w"]) + lp["in_proj_b"]
        q, k, v = jnp.split(qkv, 3, axis=-1)

        def heads(t):
            return jnp.transpose(t.reshape(S, B, H, Dh), (1, 2, 0, 3))

        qh, kh, vh = heads(q), heads(k), heads(v)
        s = jnp.einsum("bhqd,bhkd->bhqk", bf(qh), bf(kh),
                       preferred_element_type=jnp.float32) * (1.0 / Dh ** 0.5)
        p = jax.nn.softmax(s, axis=-1)
        a = jnp.einsum("bhqk,bhkd->bhqd", bf(p), bf(vh),
                       preferred_element_type=jnp.float32)
        a = jnp.transpose(a, (2, 0, 1, 3)).reshape(S * B, D_MODEL)
        a = mm(a, lp["out_proj_w"]) + lp["out_proj_b"]
        h = ln(h + a, lp["ln1_g"], lp["ln1_b"])
        f = jnp.maximum(mm(h, lp["ffn1_w"]) + lp["ffn1_b"], 0.0)
        f = mm(f, lp["ffn2_w"]) + lp["ffn2_b"]
        h = ln(h + f, lp["ln2_g"], lp["ln2_b"])
    return h.reshape(S, B, D_MODEL)


if __name__ == "__main__":
    # Small, module-consistent shapes.
    input_dim = 32
    heads_num = 4
    dim_feedforward = 64
    num_layers = 2
    num_classes = 10
    S, B = 8, 2  # seq-first layout, as in nn.TransformerEncoderLayer default

    key = jax.random.PRNGKey(0)
    k_param, k_x = jax.random.split(key)
    params = init_params(k_param, input_dim, heads_num, dim_feedforward,
                         num_layers, num_classes)
    x = jax.random.normal(k_x, (S, B, input_dim), jnp.float32)

    fwd = jax.jit(trans_audio_forward, static_argnums=2)
    out = jax.block_until_ready(fwd(params, x, heads_num))

    ref = reference_forward(params, x, heads_num)
    assert out.shape == (S, B, D_MODEL)
    # bf16 MXU operands + approx reciprocal in softmax -> loosened tolerance
    assert jnp.allclose(out, ref, atol=2e-2, rtol=2e-2), \
        "Pallas output mismatch vs reference"

    print("KERNEL_OK")
</pallas_src>

<mosaic_0001>
module attributes {stable_mosaic.version = 11 : i64} {
  func.func @_linear_kernel(%arg0: i32, %arg1: memref<16x32xf32, #tpu.memory_space<vmem>>, %arg2: memref<32x256xbf16, #tpu.memory_space<vmem>>, %arg3: memref<1x256xf32, #tpu.memory_space<vmem>>, %arg4: memref<16x256xf32, #tpu.memory_space<vmem>>) attributes {dimension_semantics = [#tpu.dimension_semantics<parallel>], iteration_bounds = array<i64: 1>, scalar_prefetch = 0 : i64, scratch_operands = 0 : i64, tpu.core_type = #tpu.core_type<tc>, window_params = [{transform_indices = @transform_0, window_bounds = array<i64: 16, 32>}, {pipeline_mode = #tpu.pipeline_mode<synchronous>, transform_indices = @transform_1, window_bounds = array<i64: 32, 256>}, {pipeline_mode = #tpu.pipeline_mode<synchronous>, transform_indices = @transform_2, window_bounds = array<i64: 1, 256>}, {transform_indices = @transform_3, window_bounds = array<i64: 16, 256>}]} {
    %c0 = arith.constant 0 : index
    %c0_0 = arith.constant 0 : index
    %0 = vector.load %arg1[%c0, %c0_0] : memref<16x32xf32, #tpu.memory_space<vmem>>, vector<16x32xf32>
    %1 = arith.truncf %0 : vector<16x32xf32> to vector<16x32xbf16>
    %c0_1 = arith.constant 0 : index
    %c0_2 = arith.constant 0 : index
    %2 = vector.load %arg2[%c0_1, %c0_2] : memref<32x256xbf16, #tpu.memory_space<vmem>>, vector<32x256xbf16>
    %cst = arith.constant dense<0.000000e+00> : vector<16x256xf32>
    %3 = tpu.matmul %1, %2, %cst {dimension_numbers = #tpu.dot_dimension_numbers<[1], [0], [0], [1], [0, 0, 1, 1], [], []>} : vector<16x32xbf16>, vector<32x256xbf16>, vector<16x256xf32> -> vector<16x256xf32>
    %c0_3 = arith.constant 0 : index
    %c0_4 = arith.constant 0 : index
    %4 = vector.load %arg3[%c0_3, %c0_4] : memref<1x256xf32, #tpu.memory_space<vmem>>, vector<1x256xf32>
    %5 = vector.broadcast %4 : vector<1x256xf32> to vector<16x256xf32>
    %6 = arith.addf %3, %5 : vector<16x256xf32>
    %c0_5 = arith.constant 0 : index
    %c0_6 = arith.constant 0 : index
    %7 = vector.load %arg4[%c0_5, %c0_6] : memref<16x256xf32, #tpu.memory_space<vmem>>, vector<16x256xf32>
    tpu.vector_store %arg4[%c0_5, %c0_6], %6 {strides = array<i32>} : memref<16x256xf32, #tpu.memory_space<vmem>>, vector<16x256xf32>,
    return
  }
  func.func @transform_0(%arg0: i32) -> (i32, i32) {
    %c0_i32 = arith.constant 0 : i32
    %c0_i32_0 = arith.constant 0 : i32
    return %arg0, %c0_i32 : i32, i32
  }
  func.func @transform_1(%arg0: i32) -> (i32, i32) {
    %c0_i32 = arith.constant 0 : i32
    %c0_i32_0 = arith.constant 0 : i32
    %c0_i32_1 = arith.constant 0 : i32
    return %c0_i32, %c0_i32_0 : i32, i32
  }
  func.func @transform_2(%arg0: i32) -> (i32, i32) {
    %c0_i32 = arith.constant 0 : i32
    %c0_i32_0 = arith.constant 0 : i32
    %c0_i32_1 = arith.constant 0 : i32
    return %c0_i32, %c0_i32_0 : i32, i32
  }
  func.func @transform_3(%arg0: i32) -> (i32, i32) {
    %c0_i32 = arith.constant 0 : i32
    %c0_i32_0 = arith.constant 0 : i32
    return %arg0, %c0_i32 : i32, i32
  }
}

module attributes {stable_mosaic.version = 11 : i64} {
  func.func @_linear_kernel(%arg0: i32, %arg1: memref<16x256xf32, #tpu.memory_space<vmem>>, %arg2: memref<256x768xbf16, #tpu.memory_space<vmem>>, %arg3: memref<1x768xf32, #tpu.memory_space<vmem>>, %arg4: memref<16x768xf32, #tpu.memory_space<vmem>>) attributes {dimension_semantics = [#tpu.dimension_semantics<parallel>], iteration_bounds = array<i64: 1>, scalar_prefetch = 0 : i64, scratch_operands = 0 : i64, tpu.core_type = #tpu.core_type<tc>, window_params = [{transform_indices = @transform_0, window_bounds = array<i64: 16, 256>}, {pipeline_mode = #tpu.pipeline_mode<synchronous>, transform_indices = @transform_1, window_bounds = array<i64: 256, 768>}, {pipeline_mode = #tpu.pipeline_mode<synchronous>, transform_indices = @transform_2, window_bounds = array<i64: 1, 768>}, {transform_indices = @transform_3, window_bounds = array<i64: 16, 768>}]} {
    %c0 = arith.constant 0 : index
    %c0_0 = arith.constant 0 : index
    %0 = vector.load %arg1[%c0, %c0_0] : memref<16x256xf32, #tpu.memory_space<vmem>>, vector<16x256xf32>
    %1 = arith.truncf %0 : vector<16x256xf32> to vector<16x256xbf16>
    %c0_1 = arith.constant 0 : index
    %c0_2 = arith.constant 0 : index
    %2 = vector.load %arg2[%c0_1, %c0_2] : memref<256x768xbf16, #tpu.memory_space<vmem>>, vector<256x768xbf16>
    %cst = arith.constant dense<0.000000e+00> : vector<16x768xf32>
    %3 = tpu.matmul %1, %2, %cst {dimension_numbers = #tpu.dot_dimension_numbers<[1], [0], [0], [1], [0, 0, 1, 1], [], []>} : vector<16x256xbf16>, vector<256x768xbf16>, vector<16x768xf32> -> vector<16x768xf32>
    %c0_3 = arith.constant 0 : index
    %c0_4 = arith.constant 0 : index
    %4 = vector.load %arg3[%c0_3, %c0_4] : memref<1x768xf32, #tpu.memory_space<vmem>>, vector<1x768xf32>
    %5 = vector.broadcast %4 : vector<1x768xf32> to vector<16x768xf32>
    %6 = arith.addf %3, %5 : vector<16x768xf32>
    %c0_5 = arith.constant 0 : index
    %c0_6 = arith.constant 0 : index
    %7 = vector.load %arg4[%c0_5, %c0_6] : memref<16x768xf32, #tpu.memory_space<vmem>>, vector<16x768xf32>
    tpu.vector_store %arg4[%c0_5, %c0_6], %6 {strides = array<i32>} : memref<16x768xf32, #tpu.memory_space<vmem>>, vector<16x768xf32>,
    return
  }
  func.func @transform_0(%arg0: i32) -> (i32, i32) {
    %c0_i32 = arith.constant 0 : i32
    %c0_i32_0 = arith.constant 0 : i32
    return %arg0, %c0_i32 : i32, i32
  }
  func.func @transform_1(%arg0: i32) -> (i32, i32) {
    %c0_i32 = arith.constant 0 : i32
    %c0_i32_0 = arith.constant 0 : i32
    %c0_i32_1 = arith.constant 0 : i32
    return %c0_i32, %c0_i32_0 : i32, i32
  }
  func.func @transform_2(%arg0: i32) -> (i32, i32) {
    %c0_i32 = arith.constant 0 : i32
    %c0_i32_0 = arith.constant 0 : i32
    %c0_i32_1 = arith.constant 0 : i32
    return %c0_i32, %c0_i32_0 : i32, i32
  }
  func.func @transform_3(%arg0: i32) -> (i32, i32) {
    %c0_i32 = arith.constant 0 : i32
    %c0_i32_0 = arith.constant 0 : i32
    return %arg0, %c0_i32 : i32, i32
  }
}

module attributes {stable_mosaic.version = 11 : i64} {
  func.func @_attn_kernel(%arg0: i32, %arg1: memref<1x8x768xf32, #tpu.memory_space<vmem>>, %arg2: memref<1x8x256xf32, #tpu.memory_space<vmem>>) attributes {dimension_semantics = [#tpu.dimension_semantics<parallel>], iteration_bounds = array<i64: 2>, scalar_prefetch = 0 : i64, scratch_operands = 0 : i64, tpu.core_type = #tpu.core_type<tc>, window_params = [{transform_indices = @transform_0, window_bounds = array<i64: 1, 8, 768>}, {transform_indices = @transform_1, window_bounds = array<i64: 1, 8, 256>}]} {
    %c0 = arith.constant 0 : index
    %c0_0 = arith.constant 0 : index
    %c0_1 = arith.constant 0 : index
    %0 = vector.load %arg1[%c0, %c0_0, %c0_1] : memref<1x8x768xf32, #tpu.memory_space<vmem>>, vector<1x8x768xf32>
    %1 = vector.shape_cast %0 : vector<1x8x768xf32> to vector<8x768xf32>
    %2 = vector.extract_strided_slice %1 {offsets = [0, 0], sizes = [8, 64], strides = [1, 1]} : vector<8x768xf32> to vector<8x64xf32>
    %3 = arith.truncf %2 : vector<8x64xf32> to vector<8x64xbf16>
    %4 = vector.extract_strided_slice %1 {offsets = [0, 256], sizes = [8, 64], strides = [1, 1]} : vector<8x768xf32> to vector<8x64xf32>
    %5 = arith.truncf %4 : vector<8x64xf32> to vector<8x64xbf16>
    %6 = vector.extract_strided_slice %1 {offsets = [0, 512], sizes = [8, 64], strides = [1, 1]} : vector<8x768xf32> to vector<8x64xf32>
    %7 = arith.truncf %6 : vector<8x64xf32> to vector<8x64xbf16>
    %cst = arith.constant dense<0.000000e+00> : vector<8x8xf32>
    %8 = tpu.matmul %3, %5, %cst {dimension_numbers = #tpu.dot_dimension_numbers<[1], [1], [0], [0], [0, 0, 1, 0], [], []>} : vector<8x64xbf16>, vector<8x64xbf16>, vector<8x8xf32> -> vector<8x8xf32>
    %cst_2 = arith.constant 1.250000e-01 : f32
    %9 = vector.broadcast %cst_2 : f32 to vector<8x8xf32>
    %10 = arith.mulf %8, %9 : vector<8x8xf32>
    %cst_3 = arith.constant dense<0xFF800000> : vector<8xf32>
    %11 = vector.multi_reduction <maximumf>, %10, %cst_3 [1] : vector<8x8xf32> to vector<8xf32>
    %12 = vector.shape_cast %11 : vector<8xf32> to vector<8x1xf32>
    %13 = vector.broadcast %12 : vector<8x1xf32> to vector<8x8xf32>
    %14 = arith.subf %10, %13 : vector<8x8xf32>
    %15 = math.exp %14 : vector<8x8xf32>
    %cst_4 = arith.constant dense<0.000000e+00> : vector<8xf32>
    %16 = vector.multi_reduction <add>, %15, %cst_4 [1] : vector<8x8xf32> to vector<8xf32>
    %17 = vector.shape_cast %16 : vector<8xf32> to vector<8x1xf32>
    %18 = tpu.reciprocal %17 {approx = true} : vector<8x1xf32> -> vector<8x1xf32>
    %19 = vector.broadcast %18 : vector<8x1xf32> to vector<8x8xf32>
    %20 = arith.mulf %15, %19 : vector<8x8xf32>
    %21 = arith.truncf %20 : vector<8x8xf32> to vector<8x8xbf16>
    %cst_5 = arith.constant dense<0.000000e+00> : vector<8x64xf32>
    %22 = tpu.matmul %21, %7, %cst_5 {dimension_numbers = #tpu.dot_dimension_numbers<[1], [0], [0], [1], [0, 0, 1, 1], [], []>} : vector<8x8xbf16>, vector<8x64xbf16>, vector<8x64xf32> -> vector<8x64xf32>
    %23 = vector.extract_strided_slice %1 {offsets = [0, 64], sizes = [8, 64], strides = [1, 1]} : vector<8x768xf32> to vector<8x64xf32>
    %24 = arith.truncf %23 : vector<8x64xf32> to vector<8x64xbf16>
    %25 = vector.extract_strided_slice %1 {offsets = [0, 320], sizes = [8, 64], strides = [1, 1]} : vector<8x768xf32> to vector<8x64xf32>
    %26 = arith.truncf %25 : vector<8x64xf32> to vector<8x64xbf16>
    %27 = vector.extract_strided_slice %1 {offsets = [0, 576], sizes = [8, 64], strides = [1, 1]} : vector<8x768xf32> to vector<8x64xf32>
    %28 = arith.truncf %27 : vector<8x64xf32> to vector<8x64xbf16>
    %cst_6 = arith.constant dense<0.000000e+00> : vector<8x8xf32>
    %29 = tpu.matmul %24, %26, %cst_6 {dimension_numbers = #tpu.dot_dimension_numbers<[1], [1], [0], [0], [0, 0, 1, 0], [], []>} : vector<8x64xbf16>, vector<8x64xbf16>, vector<8x8xf32> -> vector<8x8xf32>
    %cst_7 = arith.constant 1.250000e-01 : f32
    %30 = vector.broadcast %cst_7 : f32 to vector<8x8xf32>
    %31 = arith.mulf %29, %30 : vector<8x8xf32>
    %cst_8 = arith.constant dense<0xFF800000> : vector<8xf32>
    %32 = vector.multi_reduction <maximumf>, %31, %cst_8 [1] : vector<8x8xf32> to vector<8xf32>
    %33 = vector.shape_cast %32 : vector<8xf32> to vector<8x1xf32>
    %34 = vector.broadcast %33 : vector<8x1xf32> to vector<8x8xf32>
    %35 = arith.subf %31, %34 : vector<8x8xf32>
    %36 = math.exp %35 : vector<8x8xf32>
    %cst_9 = arith.constant dense<0.000000e+00> : vector<8xf32>
    %37 = vector.multi_reduction <add>, %36, %cst_9 [1] : vector<8x8xf32> to vector<8xf32>
    %38 = vector.shape_cast %37 : vector<8xf32> to vector<8x1xf32>
    %39 = tpu.reciprocal %38 {approx = true} : vector<8x1xf32> -> vector<8x1xf32>
    %40 = vector.broadcast %39 : vector<8x1xf32> to vector<8x8xf32>
    %41 = arith.mulf %36, %40 : vector<8x8xf32>
    %42 = arith.truncf %41 : vector<8x8xf32> to vector<8x8xbf16>
    %cst_10 = arith.constant dense<0.000000e+00> : vector<8x64xf32>
    %43 = tpu.matmul %42, %28, %cst_10 {dimension_numbers = #tpu.dot_dimension_numbers<[1], [0], [0], [1], [0, 0, 1, 1], [], []>} : vector<8x8xbf16>, vector<8x64xbf16>, vector<8x64xf32> -> vector<8x64xf32>
    %44 = vector.extract_strided_slice %1 {offsets = [0, 128], sizes = [8, 64], strides = [1, 1]} : vector<8x768xf32> to vector<8x64xf32>
    %45 = arith.truncf %44 : vector<8x64xf32> to vector<8x64xbf16>
    %46 = vector.extract_strided_slice %1 {offsets = [0, 384], sizes = [8, 64], strides = [1, 1]} : vector<8x768xf32> to vector<8x64xf32>
    %47 = arith.truncf %46 : vector<8x64xf32> to vector<8x64xbf16>
    %48 = vector.extract_strided_slice %1 {offsets = [0, 640], sizes = [8, 64], strides = [1, 1]} : vector<8x768xf32> to vector<8x64xf32>
    %49 = arith.truncf %48 : vector<8x64xf32> to vector<8x64xbf16>
    %cst_11 = arith.constant dense<0.000000e+00> : vector<8x8xf32>
    %50 = tpu.matmul %45, %47, %cst_11 {dimension_numbers = #tpu.dot_dimension_numbers<[1], [1], [0], [0], [0, 0, 1, 0], [], []>} : vector<8x64xbf16>, vector<8x64xbf16>, vector<8x8xf32> -> vector<8x8xf32>
    %cst_12 = arith.constant 1.250000e-01 : f32
    %51 = vector.broadcast %cst_12 : f32 to vector<8x8xf32>
    %52 = arith.mulf %50, %51 : vector<8x8xf32>
    %cst_13 = arith.constant dense<0xFF800000> : vector<8xf32>
    %53 = vector.multi_reduction <maximumf>, %52, %cst_13 [1] : vector<8x8xf32> to vector<8xf32>
    %54 = vector.shape_cast %53 : vector<8xf32> to vector<8x1xf32>
    %55 = vector.broadcast %54 : vector<8x1xf32> to vector<8x8xf32>
    %56 = arith.subf %52, %55 : vector<8x8xf32>
    %57 = math.exp %56 : vector<8x8xf32>
    %cst_14 = arith.constant dense<0.000000e+00> : vector<8xf32>
    %58 = vector.multi_reduction <add>, %57, %cst_14 [1] : vector<8x8xf32> to vector<8xf32>
    %59 = vector.shape_cast %58 : vector<8xf32> to vector<8x1xf32>
    %60 = tpu.reciprocal %59 {approx = true} : vector<8x1xf32> -> vector<8x1xf32>
    %61 = vector.broadcast %60 : vector<8x1xf32> to vector<8x8xf32>
    %62 = arith.mulf %57, %61 : vector<8x8xf32>
    %63 = arith.truncf %62 : vector<8x8xf32> to vector<8x8xbf16>
    %cst_15 = arith.constant dense<0.000000e+00> : vector<8x64xf32>
    %64 = tpu.matmul %63, %49, %cst_15 {dimension_numbers = #tpu.dot_dimension_numbers<[1], [0], [0], [1], [0, 0, 1, 1], [], []>} : vector<8x8xbf16>, vector<8x64xbf16>, vector<8x64xf32> -> vector<8x64xf32>
    %65 = vector.extract_strided_slice %1 {offsets = [0, 192], sizes = [8, 64], strides = [1, 1]} : vector<8x768xf32> to vector<8x64xf32>
    %66 = arith.truncf %65 : vector<8x64xf32> to vector<8x64xbf16>
    %67 = vector.extract_strided_slice %1 {offsets = [0, 448], sizes = [8, 64], strides = [1, 1]} : vector<8x768xf32> to vector<8x64xf32>
    %68 = arith.truncf %67 : vector<8x64xf32> to vector<8x64xbf16>
    %69 = vector.extract_strided_slice %1 {offsets = [0, 704], sizes = [8, 64], strides = [1, 1]} : vector<8x768xf32> to vector<8x64xf32>
    %70 = arith.truncf %69 : vector<8x64xf32> to vector<8x64xbf16>
    %cst_16 = arith.constant dense<0.000000e+00> : vector<8x8xf32>
    %71 = tpu.matmul %66, %68, %cst_16 {dimension_numbers = #tpu.dot_dimension_numbers<[1], [1], [0], [0], [0, 0, 1, 0], [], []>} : vector<8x64xbf16>, vector<8x64xbf16>, vector<8x8xf32> -> vector<8x8xf32>
    %cst_17 = arith.constant 1.250000e-01 : f32
    %72 = vector.broadcast %cst_17 : f32 to vector<8x8xf32>
    %73 = arith.mulf %71, %72 : vector<8x8xf32>
    %cst_18 = arith.constant dense<0xFF800000> : vector<8xf32>
    %74 = vector.multi_reduction <maximumf>, %73, %cst_18 [1] : vector<8x8xf32> to vector<8xf32>
    %75 = vector.shape_cast %74 : vector<8xf32> to vector<8x1xf32>
    %76 = vector.broadcast %75 : vector<8x1xf32> to vector<8x8xf32>
    %77 = arith.subf %73, %76 : vector<8x8xf32>
    %78 = math.exp %77 : vector<8x8xf32>
    %cst_19 = arith.constant dense<0.000000e+00> : vector<8xf32>
    %79 = vector.multi_reduction <add>, %78, %cst_19 [1] : vector<8x8xf32> to vector<8xf32>
    %80 = vector.shape_cast %79 : vector<8xf32> to vector<8x1xf32>
    %81 = tpu.reciprocal %80 {approx = true} : vector<8x1xf32> -> vector<8x1xf32>
    %82 = vector.broadcast %81 : vector<8x1xf32> to vector<8x8xf32>
    %83 = arith.mulf %78, %82 : vector<8x8xf32>
    %84 = arith.truncf %83 : vector<8x8xf32> to vector<8x8xbf16>
    %cst_20 = arith.constant dense<0.000000e+00> : vector<8x64xf32>
    %85 = tpu.matmul %84, %70, %cst_20 {dimension_numbers = #tpu.dot_dimension_numbers<[1], [0], [0], [1], [0, 0, 1, 1], [], []>} : vector<8x8xbf16>, vector<8x64xbf16>, vector<8x64xf32> -> vector<8x64xf32>
    %86 = tpu.concatenate %22, %43, %64, %85 in 1 : vector<8x64xf32>, vector<8x64xf32>, vector<8x64xf32>, vector<8x64xf32> -> vector<8x256xf32>
    %c0_21 = arith.constant 0 : index
    %c0_22 = arith.constant 0 : index
    %c0_23 = arith.constant 0 : index
    %87 = vector.load %arg2[%c0_21, %c0_22, %c0_23] : memref<1x8x256xf32, #tpu.memory_space<vmem>>, vector<1x8x256xf32>
    %88 = vector.shape_cast %87 : vector<1x8x256xf32> to vector<8x256xf32>
    %89 = vector.shape_cast %86 : vector<8x256xf32> to vector<1x8x256xf32>
    tpu.vector_store %arg2[%c0_21, %c0_22, %c0_23], %89 {strides = array<i32>} : memref<1x8x256xf32, #tpu.memory_space<vmem>>, vector<1x8x256xf32>,
    return
  }
  func.func @transform_0(%arg0: i32) -> (i32, i32, i32) {
    %c0_i32 = arith.constant 0 : i32
    %c0_i32_0 = arith.constant 0 : i32
    %c0_i32_1 = arith.constant 0 : i32
    return %arg0, %c0_i32, %c0_i32_0 : i32, i32, i32
  }
  func.func @transform_1(%arg0: i32) -> (i32, i32, i32) {
    %c0_i32 = arith.constant 0 : i32
    %c0_i32_0 = arith.constant 0 : i32
    %c0_i32_1 = arith.constant 0 : i32
    return %arg0, %c0_i32, %c0_i32_0 : i32, i32, i32
  }
}

module attributes {stable_mosaic.version = 11 : i64} {
  func.func @_post_attn_kernel(%arg0: i32, %arg1: memref<16x256xf32, #tpu.memory_space<vmem>>, %arg2: memref<16x256xf32, #tpu.memory_space<vmem>>, %arg3: memref<256x256xbf16, #tpu.memory_space<vmem>>, %arg4: memref<1x256xf32, #tpu.memory_space<vmem>>, %arg5: memref<1x256xf32, #tpu.memory_space<vmem>>, %arg6: memref<1x256xf32, #tpu.memory_space<vmem>>, %arg7: memref<256x64xbf16, #tpu.memory_space<vmem>>, %arg8: memref<1x64xf32, #tpu.memory_space<vmem>>, %arg9: memref<64x256xbf16, #tpu.memory_space<vmem>>, %arg10: memref<1x256xf32, #tpu.memory_space<vmem>>, %arg11: memref<1x256xf32, #tpu.memory_space<vmem>>, %arg12: memref<1x256xf32, #tpu.memory_space<vmem>>, %arg13: memref<16x256xf32, #tpu.memory_space<vmem>>) attributes {dimension_semantics = [#tpu.dimension_semantics<parallel>], iteration_bounds = array<i64: 1>, scalar_prefetch = 0 : i64, scratch_operands = 0 : i64, tpu.core_type = #tpu.core_type<tc>, window_params = [{transform_indices = @transform_0, window_bounds = array<i64: 16, 256>}, {transform_indices = @transform_1, window_bounds = array<i64: 16, 256>}, {pipeline_mode = #tpu.pipeline_mode<synchronous>, transform_indices = @transform_2, window_bounds = array<i64: 256, 256>}, {pipeline_mode = #tpu.pipeline_mode<synchronous>, transform_indices = @transform_3, window_bounds = array<i64: 1, 256>}, {pipeline_mode = #tpu.pipeline_mode<synchronous>, transform_indices = @transform_4, window_bounds = array<i64: 1, 256>}, {pipeline_mode = #tpu.pipeline_mode<synchronous>, transform_indices = @transform_5, window_bounds = array<i64: 1, 256>}, {pipeline_mode = #tpu.pipeline_mode<synchronous>, transform_indices = @transform_6, window_bounds = array<i64: 256, 64>}, {pipeline_mode = #tpu.pipeline_mode<synchronous>, transform_indices = @transform_7, window_bounds = array<i64: 1, 64>}, {pipeline_mode = #tpu.pipeline_mode<synchronous>, transform_indices = @transform_8, window_bounds = array<i64: 64, 256>}, {pipeline_mode = #tpu.pipeline_mode<synchronous>, transform_indices = @transform_9, window_bounds = array<i64: 1, 256>}, {pipeline_mode = #tpu.pipeline_mode<synchronous>, transform_indices = @transform_10, window_bounds = array<i64: 1, 256>}, {pipeline_mode = #tpu.pipeline_mode<synchronous>, transform_indices = @transform_11, window_bounds = array<i64: 1, 256>}, {transform_indices = @transform_12, window_bounds = array<i64: 16, 256>}]} {
    %c0 = arith.constant 0 : index
    %c0_0 = arith.constant 0 : index
    %0 = vector.load %arg2[%c0, %c0_0] : memref<16x256xf32, #tpu.memory_space<vmem>>, vector<16x256xf32>
    %c0_1 = arith.constant 0 : index
    %c0_2 = arith.constant 0 : index
    %1 = vector.load %arg1[%c0_1, %c0_2] : memref<16x256xf32, #tpu.memory_space<vmem>>, vector<16x256xf32>
    %2 = arith.truncf %1 : vector<16x256xf32> to vector<16x256xbf16>
    %c0_3 = arith.constant 0 : index
    %c0_4 = arith.constant 0 : index
    %3 = vector.load %arg3[%c0_3, %c0_4] : memref<256x256xbf16, #tpu.memory_space<vmem>>, vector<256x256xbf16>
    %cst = arith.constant dense<0.000000e+00> : vector<16x256xf32>
    %4 = tpu.matmul %2, %3, %cst {dimension_numbers = #tpu.dot_dimension_numbers<[1], [0], [0], [1], [0, 0, 1, 1], [], []>} : vector<16x256xbf16>, vector<256x256xbf16>, vector<16x256xf32> -> vector<16x256xf32>
    %c0_5 = arith.constant 0 : index
    %c0_6 = arith.constant 0 : index
    %5 = vector.load %arg4[%c0_5, %c0_6] : memref<1x256xf32, #tpu.memory_space<vmem>>, vector<1x256xf32>
    %6 = vector.broadcast %5 : vector<1x256xf32> to vector<16x256xf32>
    %7 = arith.addf %4, %6 : vector<16x256xf32>
    %8 = arith.addf %0, %7 : vector<16x256xf32>
    %c0_7 = arith.constant 0 : index
    %c0_8 = arith.constant 0 : index
    %9 = vector.load %arg5[%c0_7, %c0_8] : memref<1x256xf32, #tpu.memory_space<vmem>>, vector<1x256xf32>
    %c0_9 = arith.constant 0 : index
    %c0_10 = arith.constant 0 : index
    %10 = vector.load %arg6[%c0_9, %c0_10] : memref<1x256xf32, #tpu.memory_space<vmem>>, vector<1x256xf32>
    %cst_11 = arith.constant dense<0.000000e+00> : vector<16xf32>
    %11 = vector.multi_reduction <add>, %8, %cst_11 [1] : vector<16x256xf32> to vector<16xf32>
    %12 = vector.shape_cast %11 : vector<16xf32> to vector<16x1xf32>
    %cst_12 = arith.constant 2.560000e+02 : f32
    %13 = vector.broadcast %cst_12 : f32 to vector<16x1xf32>
    %14 = arith.divf %12, %13 : vector<16x1xf32>
    %15 = vector.broadcast %14 : vector<16x1xf32> to vector<16x256xf32>
    %16 = arith.subf %8, %15 : vector<16x256xf32>
    %17 = vector.broadcast %14 : vector<16x1xf32> to vector<16x256xf32>
    %18 = arith.subf %8, %17 : vector<16x256xf32>
    %19 = arith.mulf %16, %18 : vector<16x256xf32>
    %cst_13 = arith.constant dense<0.000000e+00> : vector<16xf32>
    %20 = vector.multi_reduction <add>, %19, %cst_13 [1] : vector<16x256xf32> to vector<16xf32>
    %21 = vector.shape_cast %20 : vector<16xf32> to vector<16x1xf32>
    %cst_14 = arith.constant 2.560000e+02 : f32
    %22 = vector.broadcast %cst_14 : f32 to vector<16x1xf32>
    %23 = arith.divf %21, %22 : vector<16x1xf32>
    %24 = vector.broadcast %14 : vector<16x1xf32> to vector<16x256xf32>
    %25 = arith.subf %8, %24 : vector<16x256xf32>
    %cst_15 = arith.constant 9.99999974E-6 : f32
    %26 = vector.broadcast %cst_15 : f32 to vector<16x1xf32>
    %27 = arith.addf %23, %26 : vector<16x1xf32>
    %28 = math.rsqrt %27 : vector<16x1xf32>
    %29 = vector.broadcast %28 : vector<16x1xf32> to vector<16x256xf32>
    %30 = arith.mulf %25, %29 : vector<16x256xf32>
    %31 = vector.broadcast %9 : vector<1x256xf32> to vector<16x256xf32>
    %32 = arith.mulf %30, %31 : vector<16x256xf32>
    %33 = vector.broadcast %10 : vector<1x256xf32> to vector<16x256xf32>
    %34 = arith.addf %32, %33 : vector<16x256xf32>
    %35 = arith.truncf %34 : vector<16x256xf32> to vector<16x256xbf16>
    %c0_16 = arith.constant 0 : index
    %c0_17 = arith.constant 0 : index
    %36 = vector.load %arg7[%c0_16, %c0_17] : memref<256x64xbf16, #tpu.memory_space<vmem>>, vector<256x64xbf16>
    %cst_18 = arith.constant dense<0.000000e+00> : vector<16x64xf32>
    %37 = tpu.matmul %35, %36, %cst_18 {dimension_numbers = #tpu.dot_dimension_numbers<[1], [0], [0], [1], [0, 0, 1, 1], [], []>} : vector<16x256xbf16>, vector<256x64xbf16>, vector<16x64xf32> -> vector<16x64xf32>
    %c0_19 = arith.constant 0 : index
    %c0_20 = arith.constant 0 : index
    %38 = vector.load %arg8[%c0_19, %c0_20] : memref<1x64xf32, #tpu.memory_space<vmem>>, vector<1x64xf32>
    %39 = vector.broadcast %38 : vector<1x64xf32> to vector<16x64xf32>
    %40 = arith.addf %37, %39 : vector<16x64xf32>
    %cst_21 = arith.constant 0.000000e+00 : f32
    %41 = vector.broadcast %cst_21 : f32 to vector<16x64xf32>
    %42 = arith.maximumf %40, %41 : vector<16x64xf32>
    %43 = arith.truncf %42 : vector<16x64xf32> to vector<16x64xbf16>
    %c0_22 = arith.constant 0 : index
    %c0_23 = arith.constant 0 : index
    %44 = vector.load %arg9[%c0_22, %c0_23] : memref<64x256xbf16, #tpu.memory_space<vmem>>, vector<64x256xbf16>
    %cst_24 = arith.constant dense<0.000000e+00> : vector<16x256xf32>
    %45 = tpu.matmul %43, %44, %cst_24 {dimension_numbers = #tpu.dot_dimension_numbers<[1], [0], [0], [1], [0, 0, 1, 1], [], []>} : vector<16x64xbf16>, vector<64x256xbf16>, vector<16x256xf32> -> vector<16x256xf32>
    %c0_25 = arith.constant 0 : index
    %c0_26 = arith.constant 0 : index
    %46 = vector.load %arg10[%c0_25, %c0_26] : memref<1x256xf32, #tpu.memory_space<vmem>>, vector<1x256xf32>
    %47 = vector.broadcast %46 : vector<1x256xf32> to vector<16x256xf32>
    %48 = arith.addf %45, %47 : vector<16x256xf32>
    %49 = arith.addf %34, %48 : vector<16x256xf32>
    %c0_27 = arith.constant 0 : index
    %c0_28 = arith.constant 0 : index
    %50 = vector.load %arg11[%c0_27, %c0_28] : memref<1x256xf32, #tpu.memory_space<vmem>>, vector<1x256xf32>
    %c0_29 = arith.constant 0 : index
    %c0_30 = arith.constant 0 : index
    %51 = vector.load %arg12[%c0_29, %c0_30] : memref<1x256xf32, #tpu.memory_space<vmem>>, vector<1x256xf32>
    %cst_31 = arith.constant dense<0.000000e+00> : vector<16xf32>
    %52 = vector.multi_reduction <add>, %49, %cst_31 [1] : vector<16x256xf32> to vector<16xf32>
    %53 = vector.shape_cast %52 : vector<16xf32> to vector<16x1xf32>
    %cst_32 = arith.constant 2.560000e+02 : f32
    %54 = vector.broadcast %cst_32 : f32 to vector<16x1xf32>
    %55 = arith.divf %53, %54 : vector<16x1xf32>
    %56 = vector.broadcast %55 : vector<16x1xf32> to vector<16x256xf32>
    %57 = arith.subf %49, %56 : vector<16x256xf32>
    %58 = vector.broadcast %55 : vector<16x1xf32> to vector<16x256xf32>
    %59 = arith.subf %49, %58 : vector<16x256xf32>
    %60 = arith.mulf %57, %59 : vector<16x256xf32>
    %cst_33 = arith.constant dense<0.000000e+00> : vector<16xf32>
    %61 = vector.multi_reduction <add>, %60, %cst_33 [1] : vector<16x256xf32> to vector<16xf32>
    %62 = vector.shape_cast %61 : vector<16xf32> to vector<16x1xf32>
    %cst_34 = arith.constant 2.560000e+02 : f32
    %63 = vector.broadcast %cst_34 : f32 to vector<16x1xf32>
    %64 = arith.divf %62, %63 : vector<16x1xf32>
    %65 = vector.broadcast %55 : vector<16x1xf32> to vector<16x256xf32>
    %66 = arith.subf %49, %65 : vector<16x256xf32>
    %cst_35 = arith.constant 9.99999974E-6 : f32
    %67 = vector.broadcast %cst_35 : f32 to vector<16x1xf32>
    %68 = arith.addf %64, %67 : vector<16x1xf32>
    %69 = math.rsqrt %68 : vector<16x1xf32>
    %70 = vector.broadcast %69 : vector<16x1xf32> to vector<16x256xf32>
    %71 = arith.mulf %66, %70 : vector<16x256xf32>
    %72 = vector.broadcast %50 : vector<1x256xf32> to vector<16x256xf32>
    %73 = arith.mulf %71, %72 : vector<16x256xf32>
    %74 = vector.broadcast %51 : vector<1x256xf32> to vector<16x256xf32>
    %75 = arith.addf %73, %74 : vector<16x256xf32>
    %c0_36 = arith.constant 0 : index
    %c0_37 = arith.constant 0 : index
    %76 = vector.load %arg13[%c0_36, %c0_37] : memref<16x256xf32, #tpu.memory_space<vmem>>, vector<16x256xf32>
    tpu.vector_store %arg13[%c0_36, %c0_37], %75 {strides = array<i32>} : memref<16x256xf32, #tpu.memory_space<vmem>>, vector<16x256xf32>,
    return
  }
  func.func @transform_0(%arg0: i32) -> (i32, i32) {
    %c0_i32 = arith.constant 0 : i32
    %c0_i32_0 = arith.constant 0 : i32
    return %arg0, %c0_i32 : i32, i32
  }
  func.func @transform_1(%arg0: i32) -> (i32, i32) {
    %c0_i32 = arith.constant 0 : i32
    %c0_i32_0 = arith.constant 0 : i32
    return %arg0, %c0_i32 : i32, i32
  }
  func.func @transform_2(%arg0: i32) -> (i32, i32) {
    %c0_i32 = arith.constant 0 : i32
    %c0_i32_0 = arith.constant 0 : i32
    %c0_i32_1 = arith.constant 0 : i32
    return %c0_i32, %c0_i32_0 : i32, i32
  }
  func.func @transform_3(%arg0: i32) -> (i32, i32) {
    %c0_i32 = arith.constant 0 : i32
    %c0_i32_0 = arith.constant 0 : i32
    %c0_i32_1 = arith.constant 0 : i32
    return %c0_i32, %c0_i32_0 : i32, i32
  }
  func.func @transform_4(%arg0: i32) -> (i32, i32) {
    %c0_i32 = arith.constant 0 : i32
    %c0_i32_0 = arith.constant 0 : i32
    %c0_i32_1 = arith.constant 0 : i32
    return %c0_i32, %c0_i32_0 : i32, i32
  }
  func.func @transform_5(%arg0: i32) -> (i32, i32) {
    %c0_i32 = arith.constant 0 : i32
    %c0_i32_0 = arith.constant 0 : i32
    %c0_i32_1 = arith.constant 0 : i32
    return %c0_i32, %c0_i32_0 : i32, i32
  }
  func.func @transform_6(%arg0: i32) -> (i32, i32) {
    %c0_i32 = arith.constant 0 : i32
    %c0_i32_0 = arith.constant 0 : i32
    %c0_i32_1 = arith.constant 0 : i32
    return %c0_i32, %c0_i32_0 : i32, i32
  }
  func.func @transform_7(%arg0: i32) -> (i32, i32) {
    %c0_i32 = arith.constant 0 : i32
    %c0_i32_0 = arith.constant 0 : i32
    %c0_i32_1 = arith.constant 0 : i32
    return %c0_i32, %c0_i32_0 : i32, i32
  }
  func.func @transform_8(%arg0: i32) -> (i32, i32) {
    %c0_i32 = arith.constant 0 : i32
    %c0_i32_0 = arith.constant 0 : i32
    %c0_i32_1 = arith.constant 0 : i32
    return %c0_i32, %c0_i32_0 : i32, i32
  }
  func.func @transform_9(%arg0: i32) -> (i32, i32) {
    %c0_i32 = arith.constant 0 : i32
    %c0_i32_0 = arith.constant 0 : i32
    %c0_i32_1 = arith.constant 0 : i32
    return %c0_i32, %c0_i32_0 : i32, i32
  }
  func.func @transform_10(%arg0: i32) -> (i32, i32) {
    %c0_i32 = arith.constant 0 : i32
    %c0_i32_0 = arith.constant 0 : i32
    %c0_i32_1 = arith.constant 0 : i32
    return %c0_i32, %c0_i32_0 : i32, i32
  }
  func.func @transform_11(%arg0: i32) -> (i32, i32) {
    %c0_i32 = arith.constant 0 : i32
    %c0_i32_0 = arith.constant 0 : i32
    %c0_i32_1 = arith.constant 0 : i32
    return %c0_i32, %c0_i32_0 : i32, i32
  }
  func.func @transform_12(%arg0: i32) -> (i32, i32) {
    %c0_i32 = arith.constant 0 : i32
    %c0_i32_0 = arith.constant 0 : i32
    return %arg0, %c0_i32 : i32, i32
  }
}

</mosaic_0001>

<llo_original>
// kernel: trans_audio_forward.7
$region0: #{trans_audio_forward.7}
  #allocation0 [shape = 'u32[]', space=smem, size = 0x4, offset = 0x4, fixed_abs, tag = 'smem constant byte address 0x4 - core index']
  #allocation1 [shape = 'u32[144,128]{1,0:T(1,128)}', space=vmem, size = 0x12000, scoped, tag = 'internal scratch']
  %s0 = inlined_call_operand.vmem [shape: f32[16,32], index: 0, kind: input, shape index: {}]
  %s1 = inlined_call_operand.vmem [shape: bf16[32,256], index: 1, kind: input, shape index: {}]
  %s2 = inlined_call_operand.vmem [shape: f32[1,256], index: 2, kind: input, shape index: {}]
  %s3 = inlined_call_operand.vmem [shape: f32[16,256], index: 3, kind: output, shape index: {}]
  %s4 = sld [smem:[#allocation0]]
  $region22: #{trans_audio_forward.7} parent=0
    _
  %s6 = ssub.s32 1, %s4
  %s7 = scalar_select 0, %s6, %s4
  // Predicated region
  $region2: #{trans_audio_forward.7} parent=0 // pred_check
    _
  $region3: #{trans_audio_forward.7} parent=0 // pred_check_branch
    %9 = sbr.rel (0) target = $region5
  $region4: #{trans_audio_forward.7} parent=0 // pred_region
    _
  $region5: #{trans_audio_forward.7} parent=0 // pred_fallthru
    _
  // Predicated region
  $region6: #{trans_audio_forward.7} parent=0 // pred_check
    _
  $region7: #{trans_audio_forward.7} parent=0 // pred_check_branch
    %11 = sbr.rel (0) target = $region9
  $region8: #{trans_audio_forward.7} parent=0 // pred_region
    _
  $region9: #{trans_audio_forward.7} parent=0 // pred_fallthru
    _
  // Predicated region
  $region10: #{trans_audio_forward.7} parent=0 // pred_check
    _
  $region11: #{trans_audio_forward.7} parent=0 // pred_check_branch
    %13 = sbr.rel (0) target = $region13
  $region12: #{trans_audio_forward.7} parent=0 // pred_region
    _
  $region13: #{trans_audio_forward.7} parent=0 // pred_fallthru
    _
  %v15 = vld [vmem:[%s0] sm:$0xff]
  %v16 = vld [vmem:[%s0 + $0x8] sm:$0xff]
  %v17 = vpack.c.bf16 %v16, %v15
  %v18 = vld [vmem:[%s1] sm:$0xff]
  %v19 = vld [vmem:[%s1 + $0x8] sm:$0xff]
  %v20 = vld [vmem:[%s1 + $0x10] sm:$0xff]
  %v21 = vld [vmem:[%s1 + $0x18] sm:$0xff]
  %v22 = vld [vmem:[%s2] sm:$0x3]
  %v24 = vlaneseq
  %v25 = vshrl.u32 %v24, 7
  %v26 = vsub.s32 0, %v25
  %v27 = vrot.slane %v22, %v26
  %v28 = vlaneseq
  %v29 = vshrl.u32 %v28, 7
  %v30 = vsub.s32 1, %v29
  %v31 = vrot.slane %v22, %v30
  %v38 = vunpack.c.l.b16 %v18
  %v39 = vunpack.c.h.b16 %v18
  %v40 = vunpack.c.l.b16 %v19
  %v41 = vunpack.c.h.b16 %v19
  %v42 = vunpack.c.l.b16 %v20
  %v43 = vunpack.c.h.b16 %v20
  %v44 = vunpack.c.l.b16 %v21
  %v45 = vunpack.c.h.b16 %v21
  %v46 = vpack.c.b16 %v40, %v38
  %v47 = vpack.c.b16 %v41, %v39
  %v48 = vpack.c.b16 %v44, %v42
  %v49 = vpack.c.b16 %v45, %v43
  %vm54 = vcmask 261120
  %v56 = vsel %vm54, %v17, 0
  %58 = vmatprep.subr.bf16.mxu0 %v47
  %59 = vmatpush1.bf16.msra.mxu0 %v46
  %60 = vmatprep.subr.bf16.mxu0 %v49
  %61 = vmatpush1.bf16.msra.mxu0 %v48
  %62 = vmatprep.subr.bf16.mxu0 0
  %63 = vmatpush1.bf16.msra.mxu0 0
  %64 = vmatprep.subr.bf16.mxu0 0
  %65 = vmatpush1.bf16.msra.mxu0 0
  %66 = vmatprep.subr.bf16.mxu0 0
  %67 = vmatpush1.bf16.msra.mxu0 0
  %68 = vmatprep.subr.bf16.mxu0 0
  %69 = vmatpush1.bf16.msra.mxu0 0
  %70 = vmatprep.subr.bf16.mxu0 0
  %71 = vmatpush1.bf16.msra.mxu0 0
  %72 = vmatprep.subr.bf16.mxu0 0
  %73 = vmatpush1.bf16.msra.mxu0 0
  %74 = vmatprep.subr.bf16.mxu0 0
  %75 = vmatpush1.bf16.msra.mxu0 0
  %76 = vmatprep.subr.bf16.mxu0 0
  %77 = vmatpush1.bf16.msra.mxu0 0
  %78 = vmatprep.subr.bf16.mxu0 0
  %79 = vmatpush1.bf16.msra.mxu0 0
  %80 = vmatprep.subr.bf16.mxu0 0
  %81 = vmatpush1.bf16.msra.mxu0 0
  %82 = vmatprep.subr.bf16.mxu0 0
  %83 = vmatpush1.bf16.msra.mxu0 0
  %84 = vmatprep.subr.bf16.mxu0 0
  %85 = vmatpush1.bf16.msra.mxu0 0
  %86 = vmatprep.subr.bf16.mxu0 0
  %87 = vmatpush1.bf16.msra.mxu0 0
  %88 = vmatprep.subr.bf16.mxu0 0
  %89 = vmatpush1.bf16.msra.mxu0 0
  %90 = vmatprep.mubr.bf16.mxu0 0
  %91 = vmatmul.mubr.bf16.gmra.mrb[0].mxu0 %v56
  %v92 = vpop.f32.mrb[0].mxu0
  %v93 = vadd.f32 %v27, %v92
  %v94 = vpop.f32.mrb[0].mxu0
  %v95 = vadd.f32 %v31, %v94
  %v96 = vpop.f32.mrb[0].mxu0
  %v97 = vadd.f32 %v27, %v96
  %v98 = vpop.f32.mrb[0].mxu0
  %v99 = vadd.f32 %v31, %v98
  %100 = vdwg.mxu0
  %101 = vst [vmem:[%s3] sm:$0xff] %v93
  %102 = vst [vmem:[%s3 + $0x8] sm:$0xff] %v95
  %103 = vst [vmem:[%s3 + $0x10] sm:$0xff] %v97
  %104 = vst [vmem:[%s3 + $0x18] sm:$0xff] %v99
  // Predicated region
  $region14: #{trans_audio_forward.7} parent=0 // pred_check
    _
  $region15: #{trans_audio_forward.7} parent=0 // pred_check_branch
    %106 = sbr.rel (0) target = $region17
  $region16: #{trans_audio_forward.7} parent=0 // pred_region
    _
  $region17: #{trans_audio_forward.7} parent=0 // pred_fallthru
    _
  // Predicated region
  $region18: #{trans_audio_forward.7} parent=0 // pred_check
    _
  $region19: #{trans_audio_forward.7} parent=0 // pred_check_branch
    %108 = sbr.rel (0) target = $region21
  $region20: #{trans_audio_forward.7} parent=0 // pred_region
    _
  $region21: #{trans_audio_forward.7} parent=0 // pred_fallthru
    _

// kernel: trans_audio_forward.9
$region0: #{trans_audio_forward.9}
  #allocation0 [shape = 'u32[]', space=smem, size = 0x4, offset = 0x4, fixed_abs, tag = 'smem constant byte address 0x4 - core index']
  #allocation1 [shape = 'u32[144,128]{1,0:T(1,128)}', space=vmem, size = 0x12000, scoped, tag = 'internal scratch']
  %s0 = inlined_call_operand.vmem [shape: f32[2,8,768], index: 0, kind: input, shape index: {}]
  %s1 = inlined_call_operand.vmem [shape: f32[2,8,256], index: 1, kind: output, shape index: {}]
  %s2 = sld [smem:[#allocation0]]
  $region37: #{trans_audio_forward.9} parent=0
    _
  %s4 = ssub.s32 1, %s2
  %s5 = scalar_select 0, %s4, %s2
  loop: start=0, step=1, limit=4
  $region2: #{trans_audio_forward.9} parent=0 // loop_pre_header
    _
  $region3: #{trans_audio_forward.9} parent=0 // loop_header
    %s7 = sphi 0, %s11
    %p8 = scmp.ge.s32.totalorder %s7, 4
    %s17 = sphi 0, %s19
    %s20 = sphi 0, %s17
    %s21 = sphi 0, %s20
    %s37 = sphi 0, %s21
    %s43 = sphi 0, %s45
    %s46 = sphi 0, %s43
    %s47 = sphi 0, %s46
    %s63 = sphi 0, %s47
  $region4: #{trans_audio_forward.9} parent=0 // loop_header_branch
    %10 = sbr.rel (%p8) target = $region8
  $region5: #{trans_audio_forward.9} parent=0 // loop_body
    %s12 = ssub.s32 %s7, 1
    %s13 = ssub.s32 %s7, 2
    %s14 = sadd.s32 %s7, 1
    %s15 = ssub.s32 %s7, %s14
    %p16 = scmp.eq.s32.totalorder %s15, 0
    %s18 = sadd.s32 %s17, 1
    %s19 = scalar_select %p16, %s17, %s18
    %p22 = pneg %p16
    %p23 = scmp.eq.s32.totalorder %s7, 1
    %p24 = por %p22, %p23
    %p25 = scmp.ne.s32.totalorder %s17, %s20
    %p26 = scmp.eq.s32.totalorder %s7, 0
    %p27 = por %p25, %p26
    %p28 = scmp.ne.s32.totalorder %s17, %s20
    %p29 = scmp.eq.s32.totalorder %s12, 1
    %p30 = por %p28, %p29
    %p31 = scmp.ne.s32.totalorder %s20, %s21
    %p32 = scmp.eq.s32.totalorder %s12, 0
    %p33 = por %p31, %p32
    %p34 = scmp.ne.s32.totalorder %s20, %s21
    %p35 = scmp.eq.s32.totalorder %s13, 1
    %p36 = por %p34, %p35
    %p38 = scmp.ne.s32.totalorder %s21, %s37
    %p39 = scmp.eq.s32.totalorder %s13, 0
    %p40 = por %p38, %p39
    %s41 = ssub.s32 %s7, %s14
    %p42 = scmp.eq.s32.totalorder %s41, 0
    %s44 = sadd.s32 %s43, 1
    %s45 = scalar_select %p42, %s43, %s44
    %p48 = pneg %p42
    %p49 = scmp.eq.s32.totalorder %s7, 1
    %p50 = por %p48, %p49
    %p51 = scmp.ne.s32.totalorder %s43, %s46
    %p52 = scmp.eq.s32.totalorder %s7, 0
    %p53 = por %p51, %p52
    %p54 = scmp.ne.s32.totalorder %s43, %s46
    %p55 = scmp.eq.s32.totalorder %s12, 1
    %p56 = por %p54, %p55
    %p57 = scmp.ne.s32.totalorder %s46, %s47
    %p58 = scmp.eq.s32.totalorder %s12, 0
    %p59 = por %p57, %p58
    %p60 = scmp.ne.s32.totalorder %s46, %s47
    %p61 = scmp.eq.s32.totalorder %s13, 1
    %p62 = por %p60, %p61
    %p64 = scmp.ne.s32.totalorder %s47, %s63
    %p65 = scmp.eq.s32.totalorder %s13, 0
    %p66 = por %p64, %p65
    %p67 = scmp.le.s32.totalorder 1, %s7
    %p68 = scmp.lt.s32.totalorder %s7, 3
    %p69 = pnand %p67, %p68
    %p70 = pneg %p69
    // Predicated region
    $region9: #{trans_audio_forward.9} parent=5 // pred_check
      _
    $region10: #{trans_audio_forward.9} parent=5 // pred_check_branch
      %72 = sbr.rel (%p69) target = $region12
    $region11: #{trans_audio_forward.9} parent=5 // pred_region
      %s73 = ssub.s32 %s7, 1
    $region12: #{trans_audio_forward.9} parent=5 // pred_fallthru
      _
    %p74 = scmp.lt.s32.totalorder %s7, 2
    // Predicated region
    $region13: #{trans_audio_forward.9} parent=5 // pred_check
      %p75 = pneg %p74
    $region14: #{trans_audio_forward.9} parent=5 // pred_check_branch
      %77 = sbr.rel (%p75) target = $region16
    $region15: #{trans_audio_forward.9} parent=5 // pred_region
      // Predicated region
      $region17: #{trans_audio_forward.9} parent=15 // pred_check
        %p78 = pneg %p27
      $region18: #{trans_audio_forward.9} parent=15 // pred_check_branch
        %80 = sbr.rel (%p78) target = $region20
      $region19: #{trans_audio_forward.9} parent=15 // pred_region
        %p81 = scmp.lt.s32.totalorder %s7, 1
        %s82 = scalar_select %p81, %s7, 1
        %s83 = smul.addr %s82, 6
        %s84 = smul.addr %s83, 8
        %s85 = scalar_lea.vmem %s0, %s84
      $region20: #{trans_audio_forward.9} parent=15 // pred_fallthru
        _
    $region16: #{trans_audio_forward.9} parent=5 // pred_fallthru
      _
    %p86 = scmp.le.s32.totalorder 1, %s7
    %p87 = scmp.lt.s32.totalorder %s7, 3
    %p88 = pnand %p86, %p87
    %p89 = pneg %p88
    // Predicated region
    $region21: #{trans_audio_forward.9} parent=5 // pred_check
      _
    $region22: #{trans_audio_forward.9} parent=5 // pred_check_branch
      %91 = sbr.rel (%p88) target = $region24
    $region23: #{trans_audio_forward.9} parent=5 // pred_region
      %s92 = ssub.s32 %s7, 1
      %p93 = scmp.lt.s32.totalorder %s12, 1
      %s94 = scalar_select %p93, %s12, 1
      %s95 = smul.addr %s94, 6
      %s96 = smul.addr %s95, 8
      %s97 = scalar_lea.vmem %s0, %s96
      %p98 = pneg %p33
      %p99 = pneg %p30
      %p100 = pneg %p59
      %p101 = pneg %p56
      %p102 = scmp.lt.s32.totalorder %s12, 1
      %s103 = scalar_select %p102, %s12, 1
      %s104 = smul.addr %s103, 2
      %s105 = smul.addr %s104, 8
      %s106 = scalar_lea.vmem %s1, %s105
      %p107 = scmp.lt.s32.totalorder %s12, 1
      %s108 = scalar_select %p107, %s12, 1
      %s109 = smul.addr %s108, 6
      %s110 = smul.addr %s109, 8
      %s111 = scalar_lea.vmem %s0, %s110
      %p112 = scmp.lt.s32.totalorder %s12, 1
      %s113 = scalar_select %p112, %s12, 1
      %s114 = smul.addr %s113, 2
      %s115 = smul.addr %s114, 8
      %s116 = scalar_lea.vmem %s1, %s115
      %v118 = vld [vmem:[%s111] sm:$0xff]
      %v119 = vld [vmem:[%s111 + $0x8] sm:$0xff]
      %v120 = vld [vmem:[%s111 + $0x10] sm:$0xff]
      %v121 = vld [vmem:[%s111 + $0x18] sm:$0xff]
      %v122 = vld [vmem:[%s111 + $0x20] sm:$0xff]
      %v123 = vld [vmem:[%s111 + $0x28] sm:$0xff]
      %v124 = vpack.c.bf16 %v118, %v118
      %v125 = vpack.c.bf16 %v120, %v120
      %v126 = vpack.c.bf16 %v122, %v122
      %vm127 = vcmask 523264
      %v129 = vsel %vm127, %v124, 0
      %v132 = vsel %vm127, %v125, 0
      %134 = vmatprep.subr.bf16.mxu0 0
      %135 = vmatpush1.bf16.xpose.msra.mxu0 %v132
      %136 = vmatprep.subr.bf16.mxu0 0
      %137 = vmatpush1.bf16.xpose.msra.mxu0 0
      %138 = vmatprep.subr.bf16.mxu0 0
      %139 = vmatpush1.bf16.xpose.msra.mxu0 0
      %140 = vmatprep.subr.bf16.mxu0 0
      %141 = vmatpush1.bf16.xpose.msra.mxu0 0
      %142 = vmatprep.subr.bf16.mxu0 0
      %143 = vmatpush1.bf16.xpose.msra.mxu0 0
      %144 = vmatprep.subr.bf16.mxu0 0
      %145 = vmatpush1.bf16.xpose.msra.mxu0 0
      %146 = vmatprep.subr.bf16.mxu0 0
      %147 = vmatpush1.bf16.xpose.msra.mxu0 0
      %148 = vmatprep.subr.bf16.mxu0 0
      %149 = vmatpush1.bf16.xpose.msra.mxu0 0
      %150 = vmatprep.subr.bf16.mxu0 0
      %151 = vmatpush1.bf16.xpose.msra.mxu0 0
      %152 = vmatprep.subr.bf16.mxu0 0
      %153 = vmatpush1.bf16.xpose.msra.mxu0 0
      %154 = vmatprep.subr.bf16.mxu0 0
      %155 = vmatpush1.bf16.xpose.msra.mxu0 0
      %156 = vmatprep.subr.bf16.mxu0 0
      %157 = vmatpush1.bf16.xpose.msra.mxu0 0
      %158 = vmatprep.subr.bf16.mxu0 0
      %159 = vmatpush1.bf16.xpose.msra.mxu0 0
      %160 = vmatprep.subr.bf16.mxu0 0
      %161 = vmatpush1.bf16.xpose.msra.mxu0 0
      %162 = vmatprep.subr.bf16.mxu0 0
      %163 = vmatpush1.bf16.xpose.msra.mxu0 0
      %164 = vmatprep.subr.bf16.mxu0 0
      %165 = vmatpush1.bf16.xpose.msra.mxu0 0
      %166 = vmatprep.mubr.bf16.mxu0 0
      %167 = vmatmul.mubr.bf16.gmra.mrb[0].mxu0 %v129
      %v168 = vpop.f32.mrb[0].mxu0
      %v169 = vadd.f32 0.0, %v168
      %v170 = vpop.f32.mrb[0].mxu0
      %v171 = vpop.f32.mrb[0].mxu0
      %v172 = vpop.f32.mrb[0].mxu0
      %173 = vdwg.mxu0
      %v174 = vmul.f32 %v169, 0.125
      %vm175 = vcmask 64512
      %v176 = vsel %vm175, %v174, -inf
      %177 = vmax.xlane.f32.xlu0 %v176
      %v178 = vpop.xlane.xlu0 %177
      %v179 = vsub.f32 %v174, %v178
      %v180 = vmul.f32 %v179, 1.442695
      %v181 = vpow.pop %v180
      %v182 = vsel %vm175, %v181, 0.0
      %183 = vadd.xlane.f32.xlu0 %v182
      %v184 = vpop.xlane.xlu0 %183
      %v185 = vrcp.pop %v184
      %v186 = vmul.f32 %v181, %v185
      %v187 = vpack.c.bf16 %v186, %v186
      %v189 = vsel %vm175, %v187, 0
      %vm191 = vcmask 1043456
      %v193 = vsel %vm191, %v126, 0
      %195 = vmatprep.subr.bf16.mxu0 0
      %196 = vmatpush1.bf16.msra.mxu0 %v193
      %197 = vmatprep.subr.bf16.mxu0 0
      %198 = vmatpush1.bf16.msra.mxu0 0
      %199 = vmatprep.subr.bf16.mxu0 0
      %200 = vmatpush1.bf16.msra.mxu0 0
      %201 = vmatprep.subr.bf16.mxu0 0
      %202 = vmatpush1.bf16.msra.mxu0 0
      %203 = vmatprep.subr.bf16.mxu0 0
      %204 = vmatpush1.bf16.msra.mxu0 0
      %205 = vmatprep.subr.bf16.mxu0 0
      %206 = vmatpush1.bf16.msra.mxu0 0
      %207 = vmatprep.subr.bf16.mxu0 0
      %208 = vmatpush1.bf16.msra.mxu0 0
      %209 = vmatprep.subr.bf16.mxu0 0
      %210 = vmatpush1.bf16.msra.mxu0 0
      %211 = vmatprep.subr.bf16.mxu0 0
      %212 = vmatpush1.bf16.msra.mxu0 0
      %213 = vmatprep.subr.bf16.mxu0 0
      %214 = vmatpush1.bf16.msra.mxu0 0
      %215 = vmatprep.subr.bf16.mxu0 0
      %216 = vmatpush1.bf16.msra.mxu0 0
      %217 = vmatprep.subr.bf16.mxu0 0
      %218 = vmatpush1.bf16.msra.mxu0 0
      %219 = vmatprep.subr.bf16.mxu0 0
      %220 = vmatpush1.bf16.msra.mxu0 0
      %221 = vmatprep.subr.bf16.mxu0 0
      %222 = vmatpush1.bf16.msra.mxu0 0
      %223 = vmatprep.subr.bf16.mxu0 0
      %224 = vmatpush1.bf16.msra.mxu0 0
      %225 = vmatprep.subr.bf16.mxu0 0
      %226 = vmatpush1.bf16.msra.mxu0 0
      %227 = vmatprep.mubr.bf16.mxu0 0
      %228 = vmatmul.mubr.bf16.gmra.mrb[0].mxu0 %v189
      %v229 = vpop.f32.mrb[0].mxu0
      %v230 = vadd.f32 0.0, %v229
      %v231 = vpop.f32.mrb[0].mxu0
      %v232 = vpop.f32.mrb[0].mxu0
      %v233 = vpop.f32.mrb[0].mxu0
      %234 = vdwg.mxu0
      %236 = vrot.lane.b32.xlu0 %v124, 64
      %v237 = vpop.permute.xlu0 %236
      %239 = vrot.lane.b32.xlu0 %v125, 64
      %v240 = vpop.permute.xlu0 %239
      %v242 = vsel %vm127, %v237, 0
      %v245 = vsel %vm127, %v240, 0
      %247 = vmatprep.subr.bf16.mxu0 0
      %248 = vmatpush1.bf16.xpose.msra.mxu0 %v245
      %249 = vmatprep.subr.bf16.mxu0 0
      %250 = vmatpush1.bf16.xpose.msra.mxu0 0
      %251 = vmatprep.subr.bf16.mxu0 0
      %252 = vmatpush1.bf16.xpose.msra.mxu0 0
      %253 = vmatprep.subr.bf16.mxu0 0
      %254 = vmatpush1.bf16.xpose.msra.mxu0 0
      %255 = vmatprep.subr.bf16.mxu0 0
      %256 = vmatpush1.bf16.xpose.msra.mxu0 0
      %257 = vmatprep.subr.bf16.mxu0 0
      %258 = vmatpush1.bf16.xpose.msra.mxu0 0
      %259 = vmatprep.subr.bf16.mxu0 0
      %260 = vmatpush1.bf16.xpose.msra.mxu0 0
      %261 = vmatprep.subr.bf16.mxu0 0
      %262 = vmatpush1.bf16.xpose.msra.mxu0 0
      %263 = vmatprep.subr.bf16.mxu0 0
      %264 = vmatpush1.bf16.xpose.msra.mxu0 0
      %265 = vmatprep.subr.bf16.mxu0 0
      %266 = vmatpush1.bf16.xpose.msra.mxu0 0
      %267 = vmatprep.subr.bf16.mxu0 0
      %268 = vmatpush1.bf16.xpose.msra.mxu0 0
      %269 = vmatprep.subr.bf16.mxu0 0
      %270 = vmatpush1.bf16.xpose.msra.mxu0 0
      %271 = vmatprep.subr.bf16.mxu0 0
      %272 = vmatpush1.bf16.xpose.msra.mxu0 0
      %273 = vmatprep.subr.bf16.mxu0 0
      %274 = vmatpush1.bf16.xpose.msra.mxu0 0
      %275 = vmatprep.subr.bf16.mxu0 0
      %276 = vmatpush1.bf16.xpose.msra.mxu0 0
      %277 = vmatprep.subr.bf16.mxu0 0
      %278 = vmatpush1.bf16.xpose.msra.mxu0 0
      %279 = vmatprep.mubr.bf16.mxu0 0
      %280 = vmatmul.mubr.bf16.gmra.mrb[0].mxu0 %v242
      %v281 = vpop.f32.mrb[0].mxu0
      %v282 = vadd.f32 0.0, %v281
      %v283 = vpop.f32.mrb[0].mxu0
      %v284 = vpop.f32.mrb[0].mxu0
      %v285 = vpop.f32.mrb[0].mxu0
      %286 = vdwg.mxu0
      %v287 = vmul.f32 %v282, 0.125
      %v288 = vsel %vm175, %v287, -inf
      %289 = vmax.xlane.f32.xlu0 %v288
      %v290 = vpop.xlane.xlu0 %289
      %v291 = vsub.f32 %v287, %v290
      %v292 = vmul.f32 %v291, 1.442695
      %v293 = vpow.pop %v292
      %v294 = vsel %vm175, %v293, 0.0
      %295 = vadd.xlane.f32.xlu0 %v294
      %v296 = vpop.xlane.xlu0 %295
      %v297 = vrcp.pop %v296
      %v298 = vmul.f32 %v293, %v297
      %v299 = vpack.c.bf16 %v298, %v298
      %301 = vrot.lane.b32.xlu0 %v126, 64
      %v302 = vpop.permute.xlu0 %301
      %v304 = vsel %vm175, %v299, 0
      %v307 = vsel %vm191, %v302, 0
      %309 = vmatprep.subr.bf16.mxu0 0
      %310 = vmatpush1.bf16.msra.mxu0 %v307
      %311 = vmatprep.subr.bf16.mxu0 0
      %312 = vmatpush1.bf16.msra.mxu0 0
      %313 = vmatprep.subr.bf16.mxu0 0
      %314 = vmatpush1.bf16.msra.mxu0 0
      %315 = vmatprep.subr.bf16.mxu0 0
      %316 = vmatpush1.bf16.msra.mxu0 0
      %317 = vmatprep.subr.bf16.mxu0 0
      %318 = vmatpush1.bf16.msra.mxu0 0
      %319 = vmatprep.subr.bf16.mxu0 0
      %320 = vmatpush1.bf16.msra.mxu0 0
      %321 = vmatprep.subr.bf16.mxu0 0
      %322 = vmatpush1.bf16.msra.mxu0 0
      %323 = vmatprep.subr.bf16.mxu0 0
      %324 = vmatpush1.bf16.msra.mxu0 0
      %325 = vmatprep.subr.bf16.mxu0 0
      %326 = vmatpush1.bf16.msra.mxu0 0
      %327 = vmatprep.subr.bf16.mxu0 0
      %328 = vmatpush1.bf16.msra.mxu0 0
      %329 = vmatprep.subr.bf16.mxu0 0
      %330 = vmatpush1.bf16.msra.mxu0 0
      %331 = vmatprep.subr.bf16.mxu0 0
      %332 = vmatpush1.bf16.msra.mxu0 0
      %333 = vmatprep.subr.bf16.mxu0 0
      %334 = vmatpush1.bf16.msra.mxu0 0
      %335 = vmatprep.subr.bf16.mxu0 0
      %336 = vmatpush1.bf16.msra.mxu0 0
      %337 = vmatprep.subr.bf16.mxu0 0
      %338 = vmatpush1.bf16.msra.mxu0 0
      %339 = vmatprep.subr.bf16.mxu0 0
      %340 = vmatpush1.bf16.msra.mxu0 0
      %341 = vmatprep.mubr.bf16.mxu0 0
      %342 = vmatmul.mubr.bf16.gmra.mrb[0].mxu0 %v304
      %v343 = vpop.f32.mrb[0].mxu0
      %v344 = vadd.f32 0.0, %v343
      %v345 = vpop.f32.mrb[0].mxu0
      %v346 = vpop.f32.mrb[0].mxu0
      %v347 = vpop.f32.mrb[0].mxu0
      %348 = vdwg.mxu0
      %v349 = vpack.c.bf16 %v119, %v119
      %v350 = vpack.c.bf16 %v121, %v121
      %v351 = vpack.c.bf16 %v123, %v123
      %v353 = vsel %vm127, %v349, 0
      %v356 = vsel %vm127, %v350, 0
      %358 = vmatprep.subr.bf16.mxu0 0
      %359 = vmatpush1.bf16.xpose.msra.mxu0 %v356
      %360 = vmatprep.subr.bf16.mxu0 0
      %361 = vmatpush1.bf16.xpose.msra.mxu0 0
      %362 = vmatprep.subr.bf16.mxu0 0
      %363 = vmatpush1.bf16.xpose.msra.mxu0 0
      %364 = vmatprep.subr.bf16.mxu0 0
      %365 = vmatpush1.bf16.xpose.msra.mxu0 0
      %366 = vmatprep.subr.bf16.mxu0 0
      %367 = vmatpush1.bf16.xpose.msra.mxu0 0
      %368 = vmatprep.subr.bf16.mxu0 0
      %369 = vmatpush1.bf16.xpose.msra.mxu0 0
      %370 = vmatprep.subr.bf16.mxu0 0
      %371 = vmatpush1.bf16.xpose.msra.mxu0 0
      %372 = vmatprep.subr.bf16.mxu0 0
      %373 = vmatpush1.bf16.xpose.msra.mxu0 0
      %374 = vmatprep.subr.bf16.mxu0 0
      %375 = vmatpush1.bf16.xpose.msra.mxu0 0
      %376 = vmatprep.subr.bf16.mxu0 0
      %377 = vmatpush1.bf16.xpose.msra.mxu0 0
      %378 = vmatprep.subr.bf16.mxu0 0
      %379 = vmatpush1.bf16.xpose.msra.mxu0 0
      %380 = vmatprep.subr.bf16.mxu0 0
      %381 = vmatpush1.bf16.xpose.msra.mxu0 0
      %382 = vmatprep.subr.bf16.mxu0 0
      %383 = vmatpush1.bf16.xpose.msra.mxu0 0
      %384 = vmatprep.subr.bf16.mxu0 0
      %385 = vmatpush1.bf16.xpose.msra.mxu0 0
      %386 = vmatprep.subr.bf16.mxu0 0
      %387 = vmatpush1.bf16.xpose.msra.mxu0 0
      %388 = vmatprep.subr.bf16.mxu0 0
      %389 = vmatpush1.bf16.xpose.msra.mxu0 0
      %390 = vmatprep.mubr.bf16.mxu0 0
      %391 = vmatmul.mubr.bf16.gmra.mrb[0].mxu0 %v353
      %v392 = vpop.f32.mrb[0].mxu0
      %v393 = vadd.f32 0.0, %v392
      %v394 = vpop.f32.mrb[0].mxu0
      %v395 = vpop.f32.mrb[0].mxu0
      %v396 = vpop.f32.mrb[0].mxu0
      %397 = vdwg.mxu0
      %v398 = vmul.f32 %v393, 0.125
      %v399 = vsel %vm175, %v398, -inf
      %400 = vmax.xlane.f32.xlu0 %v399
      %v401 = vpop.xlane.xlu0 %400
      %v402 = vsub.f32 %v398, %v401
      %v403 = vmul.f32 %v402, 1.442695
      %v404 = vpow.pop %v403
      %v405 = vsel %vm175, %v404, 0.0
      %406 = vadd.xlane.f32.xlu0 %v405
      %v407 = vpop.xlane.xlu0 %406
      %v408 = vrcp.pop %v407
      %v409 = vmul.f32 %v404, %v408
      %v410 = vpack.c.bf16 %v409, %v409
      %v412 = vsel %vm175, %v410, 0
      %v415 = vsel %vm191, %v351, 0
      %417 = vmatprep.subr.bf16.mxu0 0
      %418 = vmatpush1.bf16.msra.mxu0 %v415
      %419 = vmatprep.subr.bf16.mxu0 0
      %420 = vmatpush1.bf16.msra.mxu0 0
      %421 = vmatprep.subr.bf16.mxu0 0
      %422 = vmatpush1.bf16.msra.mxu0 0
      %423 = vmatprep.subr.bf16.mxu0 0
      %424 = vmatpush1.bf16.msra.mxu0 0
      %425 = vmatprep.subr.bf16.mxu0 0
      %426 = vmatpush1.bf16.msra.mxu0 0
      %427 = vmatprep.subr.bf16.mxu0 0
      %428 = vmatpush1.bf16.msra.mxu0 0
      %429 = vmatprep.subr.bf16.mxu0 0
      %430 = vmatpush1.bf16.msra.mxu0 0
      %431 = vmatprep.subr.bf16.mxu0 0
      %432 = vmatpush1.bf16.msra.mxu0 0
      %433 = vmatprep.subr.bf16.mxu0 0
      %434 = vmatpush1.bf16.msra.mxu0 0
      %435 = vmatprep.subr.bf16.mxu0 0
      %436 = vmatpush1.bf16.msra.mxu0 0
      %437 = vmatprep.subr.bf16.mxu0 0
      %438 = vmatpush1.bf16.msra.mxu0 0
      %439 = vmatprep.subr.bf16.mxu0 0
      %440 = vmatpush1.bf16.msra.mxu0 0
      %441 = vmatprep.subr.bf16.mxu0 0
      %442 = vmatpush1.bf16.msra.mxu0 0
      %443 = vmatprep.subr.bf16.mxu0 0
      %444 = vmatpush1.bf16.msra.mxu0 0
      %445 = vmatprep.subr.bf16.mxu0 0
      %446 = vmatpush1.bf16.msra.mxu0 0
      %447 = vmatprep.subr.bf16.mxu0 0
      %448 = vmatpush1.bf16.msra.mxu0 0
      %449 = vmatprep.mubr.bf16.mxu0 0
      %450 = vmatmul.mubr.bf16.gmra.mrb[0].mxu0 %v412
      %v451 = vpop.f32.mrb[0].mxu0
      %v452 = vadd.f32 0.0, %v451
      %v453 = vpop.f32.mrb[0].mxu0
      %v454 = vpop.f32.mrb[0].mxu0
      %v455 = vpop.f32.mrb[0].mxu0
      %456 = vdwg.mxu0
      %458 = vrot.lane.b32.xlu0 %v349, 64
      %v459 = vpop.permute.xlu0 %458
      %461 = vrot.lane.b32.xlu0 %v350, 64
      %v462 = vpop.permute.xlu0 %461
      %v464 = vsel %vm127, %v459, 0
      %v467 = vsel %vm127, %v462, 0
      %469 = vmatprep.subr.bf16.mxu0 0
      %470 = vmatpush1.bf16.xpose.msra.mxu0 %v467
      %471 = vmatprep.subr.bf16.mxu0 0
      %472 = vmatpush1.bf16.xpose.msra.mxu0 0
      %473 = vmatprep.subr.bf16.mxu0 0
      %474 = vmatpush1.bf16.xpose.msra.mxu0 0
      %475 = vmatprep.subr.bf16.mxu0 0
      %476 = vmatpush1.bf16.xpose.msra.mxu0 0
      %477 = vmatprep.subr.bf16.mxu0 0
      %478 = vmatpush1.bf16.xpose.msra.mxu0 0
      %479 = vmatprep.subr.bf16.mxu0 0
      %480 = vmatpush1.bf16.xpose.msra.mxu0 0
      %481 = vmatprep.subr.bf16.mxu0 0
      %482 = vmatpush1.bf16.xpose.msra.mxu0 0
      %483 = vmatprep.subr.bf16.mxu0 0
      %484 = vmatpush1.bf16.xpose.msra.mxu0 0
      %485 = vmatprep.subr.bf16.mxu0 0
      %486 = vmatpush1.bf16.xpose.msra.mxu0 0
      %487 = vmatprep.subr.bf16.mxu0 0
      %488 = vmatpush1.bf16.xpose.msra.mxu0 0
      %489 = vmatprep.subr.bf16.mxu0 0
      %490 = vmatpush1.bf16.xpose.msra.mxu0 0
      %491 = vmatprep.subr.bf16.mxu0 0
      %492 = vmatpush1.bf16.xpose.msra.mxu0 0
      %493 = vmatprep.subr.bf16.mxu0 0
      %494 = vmatpush1.bf16.xpose.msra.mxu0 0
      %495 = vmatprep.subr.bf16.mxu0 0
      %496 = vmatpush1.bf16.xpose.msra.mxu0 0
      %497 = vmatprep.subr.bf16.mxu0 0
      %498 = vmatpush1.bf16.xpose.msra.mxu0 0
      %499 = vmatprep.subr.bf16.mxu0 0
      %500 = vmatpush1.bf16.xpose.msra.mxu0 0
      %501 = vmatprep.mubr.bf16.mxu0 0
      %502 = vmatmul.mubr.bf16.gmra.mrb[0].mxu0 %v464
      %v503 = vpop.f32.mrb[0].mxu0
      %v504 = vadd.f32 0.0, %v503
      %v505 = vpop.f32.mrb[0].mxu0
      %v506 = vpop.f32.mrb[0].mxu0
      %v507 = vpop.f32.mrb[0].mxu0
      %508 = vdwg.mxu0
      %v509 = vmul.f32 %v504, 0.125
      %v510 = vsel %vm175, %v509, -inf
      %511 = vmax.xlane.f32.xlu0 %v510
      %v512 = vpop.xlane.xlu0 %511
      %v513 = vsub.f32 %v509, %v512
      %v514 = vmul.f32 %v513, 1.442695
      %v515 = vpow.pop %v514
      %v516 = vsel %vm175, %v515, 0.0
      %517 = vadd.xlane.f32.xlu0 %v516
      %v518 = vpop.xlane.xlu0 %517
      %v519 = vrcp.pop %v518
      %v520 = vmul.f32 %v515, %v519
      %v521 = vpack.c.bf16 %v520, %v520
      %523 = vrot.lane.b32.xlu0 %v351, 64
      %v524 = vpop.permute.xlu0 %523
      %v526 = vsel %vm175, %v521, 0
      %v529 = vsel %vm191, %v524, 0
      %531 = vmatprep.subr.bf16.mxu0 0
      %532 = vmatpush1.bf16.msra.mxu0 %v529
      %533 = vmatprep.subr.bf16.mxu0 0
      %534 = vmatpush1.bf16.msra.mxu0 0
      %535 = vmatprep.subr.bf16.mxu0 0
      %536 = vmatpush1.bf16.msra.mxu0 0
      %537 = vmatprep.subr.bf16.mxu0 0
      %538 = vmatpush1.bf16.msra.mxu0 0
      %539 = vmatprep.subr.bf16.mxu0 0
      %540 = vmatpush1.bf16.msra.mxu0 0
      %541 = vmatprep.subr.bf16.mxu0 0
      %542 = vmatpush1.bf16.msra.mxu0 0
      %543 = vmatprep.subr.bf16.mxu0 0
      %544 = vmatpush1.bf16.msra.mxu0 0
      %545 = vmatprep.subr.bf16.mxu0 0
      %546 = vmatpush1.bf16.msra.mxu0 0
      %547 = vmatprep.subr.bf16.mxu0 0
      %548 = vmatpush1.bf16.msra.mxu0 0
      %549 = vmatprep.subr.bf16.mxu0 0
      %550 = vmatpush1.bf16.msra.mxu0 0
      %551 = vmatprep.subr.bf16.mxu0 0
      %552 = vmatpush1.bf16.msra.mxu0 0
      %553 = vmatprep.subr.bf16.mxu0 0
      %554 = vmatpush1.bf16.msra.mxu0 0
      %555 = vmatprep.subr.bf16.mxu0 0
      %556 = vmatpush1.bf16.msra.mxu0 0
      %557 = vmatprep.subr.bf16.mxu0 0
      %558 = vmatpush1.bf16.msra.mxu0 0
      %559 = vmatprep.subr.bf16.mxu0 0
      %560 = vmatpush1.bf16.msra.mxu0 0
      %561 = vmatprep.subr.bf16.mxu0 0
      %562 = vmatpush1.bf16.msra.mxu0 0
      %563 = vmatprep.mubr.bf16.mxu0 0
      %564 = vmatmul.mubr.bf16.gmra.mrb[0].mxu0 %v526
      %v565 = vpop.f32.mrb[0].mxu0
      %v566 = vadd.f32 0.0, %v565
      %v567 = vpop.f32.mrb[0].mxu0
      %v568 = vpop.f32.mrb[0].mxu0
      %v569 = vpop.f32.mrb[0].mxu0
      %570 = vdwg.mxu0
      %572 = vrot.lane.b32.xlu0 %v344, 64
      %v573 = vpop.permute.xlu0 %572
      %576 = vrot.lane.b32.xlu0 %v566, 64
      %v577 = vpop.permute.xlu0 %576
      %v579 = vsel %vm127, %v230, %v573
      %v580 = vsel %vm127, %v452, %v577
      %581 = vst [vmem:[%s116] sm:$0xff] %v579
      %582 = vst [vmem:[%s116 + $0x8] sm:$0xff] %v580
      %p583 = scmp.lt.s32.totalorder %s12, 1
      %s584 = scalar_select %p583, %s12, 1
      %s585 = smul.addr %s584, 2
      %s586 = smul.addr %s585, 8
      %s587 = scalar_lea.vmem %s1, %s586
      // Predicated region
      $region25: #{trans_audio_forward.9} parent=23 // pred_check
        %p588 = pneg %p56
      $region26: #{trans_audio_forward.9} parent=23 // pred_check_branch
        %590 = sbr.rel (%p588) target = $region28
      $region27: #{trans_audio_forward.9} parent=23 // pred_region
        _
      $region28: #{trans_audio_forward.9} parent=23 // pred_fallthru
        _
    $region24: #{trans_audio_forward.9} parent=5 // pred_fallthru
      _
    %p591 = scmp.le.s32.totalorder 2, %s7
    // Predicated region
    $region29: #{trans_audio_forward.9} parent=5 // pred_check
      %p592 = pneg %p591
    $region30: #{trans_audio_forward.9} parent=5 // pred_check_branch
      %594 = sbr.rel (%p592) target = $region32
    $region31: #{trans_audio_forward.9} parent=5 // pred_region
      %s595 = ssub.s32 %s7, 2
      // Predicated region
      $region33: #{trans_audio_forward.9} parent=31 // pred_check
        %p596 = pneg %p62
      $region34: #{trans_audio_forward.9} parent=31 // pred_check_branch
        %598 = sbr.rel (%p596) target = $region36
      $region35: #{trans_audio_forward.9} parent=31 // pred_region
        %p599 = scmp.lt.s32.totalorder %s13, 1
        %s600 = scalar_select %p599, %s13, 1
        %s601 = smul.addr %s600, 2
        %s602 = smul.addr %s601, 8
        %s603 = scalar_lea.vmem %s1, %s602
      $region36: #{trans_audio_forward.9} parent=31 // pred_fallthru
        _
    $region32: #{trans_audio_forward.9} parent=5 // pred_fallthru
      _
  $region6: #{trans_audio_forward.9} parent=0 // loop_footer
    %s11 = sadd.s32 1, %s7
  $region7: #{trans_audio_forward.9} parent=0 // loop_footer_branch
    %6 = sbr.rel target = $region3
  $region8: #{trans_audio_forward.9} parent=0 // loop_exit
    _

// kernel: trans_audio_forward.8
$region0: #{trans_audio_forward.8}
  #allocation0 [shape = 'u32[]', space=smem, size = 0x4, offset = 0x4, fixed_abs, tag = 'smem constant byte address 0x4 - core index']
  #allocation1 [shape = 'u32[144,128]{1,0:T(1,128)}', space=vmem, size = 0x12000, scoped, tag = 'internal scratch']
  %s0 = inlined_call_operand.vmem [shape: f32[16,256], index: 0, kind: input, shape index: {}]
  %s1 = inlined_call_operand.vmem [shape: bf16[256,768], index: 1, kind: input, shape index: {}]
  %s2 = inlined_call_operand.vmem [shape: f32[1,768], index: 2, kind: input, shape index: {}]
  %s3 = inlined_call_operand.vmem [shape: f32[16,768], index: 3, kind: output, shape index: {}]
  %s4 = sld [smem:[#allocation0]]
  $region22: #{trans_audio_forward.8} parent=0
    _
  %s6 = ssub.s32 1, %s4
  %s7 = scalar_select 0, %s6, %s4
  // Predicated region
  $region2: #{trans_audio_forward.8} parent=0 // pred_check
    _
  $region3: #{trans_audio_forward.8} parent=0 // pred_check_branch
    %9 = sbr.rel (0) target = $region5
  $region4: #{trans_audio_forward.8} parent=0 // pred_region
    _
  $region5: #{trans_audio_forward.8} parent=0 // pred_fallthru
    _
  // Predicated region
  $region6: #{trans_audio_forward.8} parent=0 // pred_check
    _
  $region7: #{trans_audio_forward.8} parent=0 // pred_check_branch
    %11 = sbr.rel (0) target = $region9
  $region8: #{trans_audio_forward.8} parent=0 // pred_region
    _
  $region9: #{trans_audio_forward.8} parent=0 // pred_fallthru
    _
  // Predicated region
  $region10: #{trans_audio_forward.8} parent=0 // pred_check
    _
  $region11: #{trans_audio_forward.8} parent=0 // pred_check_branch
    %13 = sbr.rel (0) target = $region13
  $region12: #{trans_audio_forward.8} parent=0 // pred_region
    _
  $region13: #{trans_audio_forward.8} parent=0 // pred_fallthru
    _
  %v14 = vld [vmem:[%s0] sm:$0xff]
  %v15 = vld [vmem:[%s0 + $0x8] sm:$0xff]
  %v16 = vld [vmem:[%s0 + $0x10] sm:$0xff]
  %v17 = vld [vmem:[%s0 + $0x18] sm:$0xff]
  %v18 = vpack.c.bf16 %v16, %v14
  %v19 = vpack.c.bf16 %v17, %v15
  %v20 = vld [vmem:[%s1] sm:$0xff]
  %v21 = vld [vmem:[%s1 + $0x8] sm:$0xff]
  %v22 = vld [vmem:[%s1 + $0x10] sm:$0xff]
  %v23 = vld [vmem:[%s1 + $0x18] sm:$0xff]
  %v24 = vld [vmem:[%s1 + $0x20] sm:$0xff]
  %v25 = vld [vmem:[%s1 + $0x28] sm:$0xff]
  %v26 = vld [vmem:[%s1 + $0x30] sm:$0xff]
  %v27 = vld [vmem:[%s1 + $0x38] sm:$0xff]
  %v28 = vld [vmem:[%s1 + $0x40] sm:$0xff]
  %v29 = vld [vmem:[%s1 + $0x48] sm:$0xff]
  %v30 = vld [vmem:[%s1 + $0x50] sm:$0xff]
  %v31 = vld [vmem:[%s1 + $0x58] sm:$0xff]
  %v32 = vld [vmem:[%s1 + $0x60] sm:$0xff]
  %v33 = vld [vmem:[%s1 + $0x68] sm:$0xff]
  %v34 = vld [vmem:[%s1 + $0x70] sm:$0xff]
  %v35 = vld [vmem:[%s1 + $0x78] sm:$0xff]
  %v36 = vld [vmem:[%s1 + $0x80] sm:$0xff]
  %v37 = vld [vmem:[%s1 + $0x88] sm:$0xff]
  %v38 = vld [vmem:[%s1 + $0x90] sm:$0xff]
  %v39 = vld [vmem:[%s1 + $0x98] sm:$0xff]
  %v40 = vld [vmem:[%s1 + $0xa0] sm:$0xff]
  %v41 = vld [vmem:[%s1 + $0xa8] sm:$0xff]
  %v42 = vld [vmem:[%s1 + $0xb0] sm:$0xff]
  %v43 = vld [vmem:[%s1 + $0xb8] sm:$0xff]
  %v44 = vld [vmem:[%s1 + $0xc0] sm:$0xff]
  %v45 = vld [vmem:[%s1 + $0xc8] sm:$0xff]
  %v46 = vld [vmem:[%s1 + $0xd0] sm:$0xff]
  %v47 = vld [vmem:[%s1 + $0xd8] sm:$0xff]
  %v48 = vld [vmem:[%s1 + $0xe0] sm:$0xff]
  %v49 = vld [vmem:[%s1 + $0xe8] sm:$0xff]
  %v50 = vld [vmem:[%s1 + $0xf0] sm:$0xff]
  %v51 = vld [vmem:[%s1 + $0xf8] sm:$0xff]
  %v52 = vld [vmem:[%s1 + $0x100] sm:$0xff]
  %v53 = vld [vmem:[%s1 + $0x108] sm:$0xff]
  %v54 = vld [vmem:[%s1 + $0x110] sm:$0xff]
  %v55 = vld [vmem:[%s1 + $0x118] sm:$0xff]
  %v56 = vld [vmem:[%s1 + $0x120] sm:$0xff]
  %v57 = vld [vmem:[%s1 + $0x128] sm:$0xff]
  %v58 = vld [vmem:[%s1 + $0x130] sm:$0xff]
  %v59 = vld [vmem:[%s1 + $0x138] sm:$0xff]
  %v60 = vld [vmem:[%s1 + $0x140] sm:$0xff]
  %v61 = vld [vmem:[%s1 + $0x148] sm:$0xff]
  %v62 = vld [vmem:[%s1 + $0x150] sm:$0xff]
  %v63 = vld [vmem:[%s1 + $0x158] sm:$0xff]
  %v64 = vld [vmem:[%s1 + $0x160] sm:$0xff]
  %v65 = vld [vmem:[%s1 + $0x168] sm:$0xff]
  %v66 = vld [vmem:[%s1 + $0x170] sm:$0xff]
  %v67 = vld [vmem:[%s1 + $0x178] sm:$0xff]
  %v68 = vld [vmem:[%s1 + $0x180] sm:$0xff]
  %v69 = vld [vmem:[%s1 + $0x188] sm:$0xff]
  %v70 = vld [vmem:[%s1 + $0x190] sm:$0xff]
  %v71 = vld [vmem:[%s1 + $0x198] sm:$0xff]
  %v72 = vld [vmem:[%s1 + $0x1a0] sm:$0xff]
  %v73 = vld [vmem:[%s1 + $0x1a8] sm:$0xff]
  %v74 = vld [vmem:[%s1 + $0x1b0] sm:$0xff]
  %v75 = vld [vmem:[%s1 + $0x1b8] sm:$0xff]
  %v76 = vld [vmem:[%s1 + $0x1c0] sm:$0xff]
  %v77 = vld [vmem:[%s1 + $0x1c8] sm:$0xff]
  %v78 = vld [vmem:[%s1 + $0x1d0] sm:$0xff]
  %v79 = vld [vmem:[%s1 + $0x1d8] sm:$0xff]
  %v80 = vld [vmem:[%s1 + $0x1e0] sm:$0xff]
  %v81 = vld [vmem:[%s1 + $0x1e8] sm:$0xff]
  %v82 = vld [vmem:[%s1 + $0x1f0] sm:$0xff]
  %v83 = vld [vmem:[%s1 + $0x1f8] sm:$0xff]
  %v84 = vld [vmem:[%s1 + $0x200] sm:$0xff]
  %v85 = vld [vmem:[%s1 + $0x208] sm:$0xff]
  %v86 = vld [vmem:[%s1 + $0x210] sm:$0xff]
  %v87 = vld [vmem:[%s1 + $0x218] sm:$0xff]
  %v88 = vld [vmem:[%s1 + $0x220] sm:$0xff]
  %v89 = vld [vmem:[%s1 + $0x228] sm:$0xff]
  %v90 = vld [vmem:[%s1 + $0x230] sm:$0xff]
  %v91 = vld [vmem:[%s1 + $0x238] sm:$0xff]
  %v92 = vld [vmem:[%s1 + $0x240] sm:$0xff]
  %v93 = vld [vmem:[%s1 + $0x248] sm:$0xff]
  %v94 = vld [vmem:[%s1 + $0x250] sm:$0xff]
  %v95 = vld [vmem:[%s1 + $0x258] sm:$0xff]
  %v96 = vld [vmem:[%s1 + $0x260] sm:$0xff]
  %v97 = vld [vmem:[%s1 + $0x268] sm:$0xff]
  %v98 = vld [vmem:[%s1 + $0x270] sm:$0xff]
  %v99 = vld [vmem:[%s1 + $0x278] sm:$0xff]
  %v100 = vld [vmem:[%s1 + $0x280] sm:$0xff]
  %v101 = vld [vmem:[%s1 + $0x288] sm:$0xff]
  %v102 = vld [vmem:[%s1 + $0x290] sm:$0xff]
  %v103 = vld [vmem:[%s1 + $0x298] sm:$0xff]
  %v104 = vld [vmem:[%s1 + $0x2a0] sm:$0xff]
  %v105 = vld [vmem:[%s1 + $0x2a8] sm:$0xff]
  %v106 = vld [vmem:[%s1 + $0x2b0] sm:$0xff]
  %v107 = vld [vmem:[%s1 + $0x2b8] sm:$0xff]
  %v108 = vld [vmem:[%s1 + $0x2c0] sm:$0xff]
  %v109 = vld [vmem:[%s1 + $0x2c8] sm:$0xff]
  %v110 = vld [vmem:[%s1 + $0x2d0] sm:$0xff]
  %v111 = vld [vmem:[%s1 + $0x2d8] sm:$0xff]
  %v112 = vld [vmem:[%s1 + $0x2e0] sm:$0xff]
  %v113 = vld [vmem:[%s1 + $0x2e8] sm:$0xff]
  %v114 = vld [vmem:[%s1 + $0x2f0] sm:$0xff]
  %v115 = vld [vmem:[%s1 + $0x2f8] sm:$0xff]
  %v116 = vld [vmem:[%s2] sm:$0x3f]
  %v118 = vlaneseq
  %v119 = vshrl.u32 %v118, 7
  %v120 = vsub.s32 0, %v119
  %v121 = vrot.slane %v116, %v120
  %v122 = vlaneseq
  %v123 = vshrl.u32 %v122, 7
  %v124 = vsub.s32 1, %v123
  %v125 = vrot.slane %v116, %v124
  %v126 = vlaneseq
  %v127 = vshrl.u32 %v126, 7
  %v128 = vsub.s32 2, %v127
  %v129 = vrot.slane %v116, %v128
  %v130 = vlaneseq
  %v131 = vshrl.u32 %v130, 7
  %v132 = vsub.s32 3, %v131
  %v133 = vrot.slane %v116, %v132
  %v134 = vlaneseq
  %v135 = vshrl.u32 %v134, 7
  %v136 = vsub.s32 4, %v135
  %v137 = vrot.slane %v116, %v136
  %v138 = vlaneseq
  %v139 = vshrl.u32 %v138, 7
  %v140 = vsub.s32 5, %v139
  %v141 = vrot.slane %v116, %v140
  %v244 = vunpack.c.l.b16 %v20
  %v245 = vunpack.c.h.b16 %v20
  %v246 = vunpack.c.l.b16 %v21
  %v247 = vunpack.c.h.b16 %v21
  %v248 = vunpack.c.l.b16 %v22
  %v249 = vunpack.c.h.b16 %v22
  %v250 = vunpack.c.l.b16 %v23
  %v251 = vunpack.c.h.b16 %v23
  %v252 = vunpack.c.l.b16 %v24
  %v253 = vunpack.c.h.b16 %v24
  %v254 = vunpack.c.l.b16 %v25
  %v255 = vunpack.c.h.b16 %v25
  %v256 = vunpack.c.l.b16 %v26
  %v257 = vunpack.c.h.b16 %v26
  %v258 = vunpack.c.l.b16 %v27
  %v259 = vunpack.c.h.b16 %v27
  %v260 = vunpack.c.l.b16 %v28
  %v261 = vunpack.c.h.b16 %v28
  %v262 = vunpack.c.l.b16 %v29
  %v263 = vunpack.c.h.b16 %v29
  %v264 = vunpack.c.l.b16 %v30
  %v265 = vunpack.c.h.b16 %v30
  %v266 = vunpack.c.l.b16 %v31
  %v267 = vunpack.c.h.b16 %v31
  %v268 = vunpack.c.l.b16 %v32
  %v269 = vunpack.c.h.b16 %v32
  %v270 = vunpack.c.l.b16 %v33
  %v271 = vunpack.c.h.b16 %v33
  %v272 = vunpack.c.l.b16 %v34
  %v273 = vunpack.c.h.b16 %v34
  %v274 = vunpack.c.l.b16 %v35
  %v275 = vunpack.c.h.b16 %v35
  %v276 = vunpack.c.l.b16 %v36
  %v277 = vunpack.c.h.b16 %v36
  %v278 = vunpack.c.l.b16 %v37
  %v279 = vunpack.c.h.b16 %v37
  %v280 = vunpack.c.l.b16 %v38
  %v281 = vunpack.c.h.b16 %v38
  %v282 = vunpack.c.l.b16 %v39
  %v283 = vunpack.c.h.b16 %v39
  %v284 = vunpack.c.l.b16 %v40
  %v285 = vunpack.c.h.b16 %v40
  %v286 = vunpack.c.l.b16 %v41
  %v287 = vunpack.c.h.b16 %v41
  %v288 = vunpack.c.l.b16 %v42
  %v289 = vunpack.c.h.b16 %v42
  %v290 = vunpack.c.l.b16 %v43
  %v291 = vunpack.c.h.b16 %v43
  %v292 = vunpack.c.l.b16 %v44
  %v293 = vunpack.c.h.b16 %v44
  %v294 = vunpack.c.l.b16 %v45
  %v295 = vunpack.c.h.b16 %v45
  %v296 = vunpack.c.l.b16 %v46
  %v297 = vunpack.c.h.b16 %v46
  %v298 = vunpack.c.l.b16 %v47
  %v299 = vunpack.c.h.b16 %v47
  %v300 = vunpack.c.l.b16 %v48
  %v301 = vunpack.c.h.b16 %v48
  %v302 = vunpack.c.l.b16 %v49
  %v303 = vunpack.c.h.b16 %v49
  %v304 = vunpack.c.l.b16 %v50
  %v305 = vunpack.c.h.b16 %v50
  %v306 = vunpack.c.l.b16 %v51
  %v307 = vunpack.c.h.b16 %v51
  %v308 = vunpack.c.l.b16 %v52
  %v309 = vunpack.c.h.b16 %v52
  %v310 = vunpack.c.l.b16 %v53
  %v311 = vunpack.c.h.b16 %v53
  %v312 = vunpack.c.l.b16 %v54
  %v313 = vunpack.c.h.b16 %v54
  %v314 = vunpack.c.l.b16 %v55
  %v315 = vunpack.c.h.b16 %v55
  %v316 = vunpack.c.l.b16 %v56
  %v317 = vunpack.c.h.b16 %v56
  %v318 = vunpack.c.l.b16 %v57
  %v319 = vunpack.c.h.b16 %v57
  %v320 = vunpack.c.l.b16 %v58
  %v321 = vunpack.c.h.b16 %v58
  %v322 = vunpack.c.l.b16 %v59
  %v323 = vunpack.c.h.b16 %v59
  %v324 = vunpack.c.l.b16 %v60
  %v325 = vunpack.c.h.b16 %v60
  %v326 = vunpack.c.l.b16 %v61
  %v327 = vunpack.c.h.b16 %v61
  %v328 = vunpack.c.l.b16 %v62
  %v329 = vunpack.c.h.b16 %v62
  %v330 = vunpack.c.l.b16 %v63
  %v331 = vunpack.c.h.b16 %v63
  %v332 = vunpack.c.l.b16 %v64
  %v333 = vunpack.c.h.b16 %v64
  %v334 = vunpack.c.l.b16 %v65
  %v335 = vunpack.c.h.b16 %v65
  %v336 = vunpack.c.l.b16 %v66
  %v337 = vunpack.c.h.b16 %v66
  %v338 = vunpack.c.l.b16 %v67
  %v339 = vunpack.c.h.b16 %v67
  %v340 = vunpack.c.l.b16 %v68
  %v341 = vunpack.c.h.b16 %v68
  %v342 = vunpack.c.l.b16 %v69
  %v343 = vunpack.c.h.b16 %v69
  %v344 = vunpack.c.l.b16 %v70
  %v345 = vunpack.c.h.b16 %v70
  %v346 = vunpack.c.l.b16 %v71
  %v347 = vunpack.c.h.b16 %v71
  %v348 = vunpack.c.l.b16 %v72
  %v349 = vunpack.c.h.b16 %v72
  %v350 = vunpack.c.l.b16 %v73
  %v351 = vunpack.c.h.b16 %v73
  %v352 = vunpack.c.l.b16 %v74
  %v353 = vunpack.c.h.b16 %v74
  %v354 = vunpack.c.l.b16 %v75
  %v355 = vunpack.c.h.b16 %v75
  %v356 = vunpack.c.l.b16 %v76
  %v357 = vunpack.c.h.b16 %v76
  %v358 = vunpack.c.l.b16 %v77
  %v359 = vunpack.c.h.b16 %v77
  %v360 = vunpack.c.l.b16 %v78
  %v361 = vunpack.c.h.b16 %v78
  %v362 = vunpack.c.l.b16 %v79
  %v363 = vunpack.c.h.b16 %v79
  %v364 = vunpack.c.l.b16 %v80
  %v365 = vunpack.c.h.b16 %v80
  %v366 = vunpack.c.l.b16 %v81
  %v367 = vunpack.c.h.b16 %v81
  %v368 = vunpack.c.l.b16 %v82
  %v369 = vunpack.c.h.b16 %v82
  %v370 = vunpack.c.l.b16 %v83
  %v371 = vunpack.c.h.b16 %v83
  %v372 = vunpack.c.l.b16 %v84
  %v373 = vunpack.c.h.b16 %v84
  %v374 = vunpack.c.l.b16 %v85
  %v375 = vunpack.c.h.b16 %v85
  %v376 = vunpack.c.l.b16 %v86
  %v377 = vunpack.c.h.b16 %v86
  %v378 = vunpack.c.l.b16 %v87
  %v379 = vunpack.c.h.b16 %v87
  %v380 = vunpack.c.l.b16 %v88
  %v381 = vunpack.c.h.b16 %v88
  %v382 = vunpack.c.l.b16 %v89
  %v383 = vunpack.c.h.b16 %v89
  %v384 = vunpack.c.l.b16 %v90
  %v385 = vunpack.c.h.b16 %v90
  %v386 = vunpack.c.l.b16 %v91
  %v387 = vunpack.c.h.b16 %v91
  %v388 = vunpack.c.l.b16 %v92
  %v389 = vunpack.c.h.b16 %v92
  %v390 = vunpack.c.l.b16 %v93
  %v391 = vunpack.c.h.b16 %v93
  %v392 = vunpack.c.l.b16 %v94
  %v393 = vunpack.c.h.b16 %v94
  %v394 = vunpack.c.l.b16 %v95
  %v395 = vunpack.c.h.b16 %v95
  %v396 = vunpack.c.l.b16 %v96
  %v397 = vunpack.c.h.b16 %v96
  %v398 = vunpack.c.l.b16 %v97
  %v399 = vunpack.c.h.b16 %v97
  %v400 = vunpack.c.l.b16 %v98
  %v401 = vunpack.c.h.b16 %v98
  %v402 = vunpack.c.l.b16 %v99
  %v403 = vunpack.c.h.b16 %v99
  %v404 = vunpack.c.l.b16 %v100
  %v405 = vunpack.c.h.b16 %v100
  %v406 = vunpack.c.l.b16 %v101
  %v407 = vunpack.c.h.b16 %v101
  %v408 = vunpack.c.l.b16 %v102
  %v409 = vunpack.c.h.b16 %v102
  %v410 = vunpack.c.l.b16 %v103
  %v411 = vunpack.c.h.b16 %v103
  %v412 = vunpack.c.l.b16 %v104
  %v413 = vunpack.c.h.b16 %v104
  %v414 = vunpack.c.l.b16 %v105
  %v415 = vunpack.c.h.b16 %v105
  %v416 = vunpack.c.l.b16 %v106
  %v417 = vunpack.c.h.b16 %v106
  %v418 = vunpack.c.l.b16 %v107
  %v419 = vunpack.c.h.b16 %v107
  %v420 = vunpack.c.l.b16 %v108
  %v421 = vunpack.c.h.b16 %v108
  %v422 = vunpack.c.l.b16 %v109
  %v423 = vunpack.c.h.b16 %v109
  %v424 = vunpack.c.l.b16 %v110
  %v425 = vunpack.c.h.b16 %v110
  %v426 = vunpack.c.l.b16 %v111
  %v427 = vunpack.c.h.b16 %v111
  %v428 = vunpack.c.l.b16 %v112
  %v429 = vunpack.c.h.b16 %v112
  %v430 = vunpack.c.l.b16 %v113
  %v431 = vunpack.c.h.b16 %v113
  %v432 = vunpack.c.l.b16 %v114
  %v433 = vunpack.c.h.b16 %v114
  %v434 = vunpack.c.l.b16 %v115
  %v435 = vunpack.c.h.b16 %v115
  %v436 = vpack.c.b16 %v250, %v244
  %v437 = vpack.c.b16 %v251, %v245
  %v438 = vpack.c.b16 %v252, %v246
  %v439 = vpack.c.b16 %v253, %v247
  %v440 = vpack.c.b16 %v254, %v248
  %v441 = vpack.c.b16 %v255, %v249
  %v442 = vpack.c.b16 %v262, %v256
  %v443 = vpack.c.b16 %v263, %v257
  %v444 = vpack.c.b16 %v264, %v258
  %v445 = vpack.c.b16 %v265, %v259
  %v446 = vpack.c.b16 %v266, %v260
  %v447 = vpack.c.b16 %v267, %v261
  %v448 = vpack.c.b16 %v274, %v268
  %v449 = vpack.c.b16 %v275, %v269
  %v450 = vpack.c.b16 %v276, %v270
  %v451 = vpack.c.b16 %v277, %v271
  %v452 = vpack.c.b16 %v278, %v272
  %v453 = vpack.c.b16 %v279, %v273
  %v454 = vpack.c.b16 %v286, %v280
  %v455 = vpack.c.b16 %v287, %v281
  %v456 = vpack.c.b16 %v288, %v282
  %v457 = vpack.c.b16 %v289, %v283
  %v458 = vpack.c.b16 %v290, %v284
  %v459 = vpack.c.b16 %v291, %v285
  %v460 = vpack.c.b16 %v298, %v292
  %v461 = vpack.c.b16 %v299, %v293
  %v462 = vpack.c.b16 %v300, %v294
  %v463 = vpack.c.b16 %v301, %v295
  %v464 = vpack.c.b16 %v302, %v296
  %v465 = vpack.c.b16 %v303, %v297
  %v466 = vpack.c.b16 %v310, %v304
  %v467 = vpack.c.b16 %v311, %v305
  %v468 = vpack.c.b16 %v312, %v306
  %v469 = vpack.c.b16 %v313, %v307
  %v470 = vpack.c.b16 %v314, %v308
  %v471 = vpack.c.b16 %v315, %v309
  %v472 = vpack.c.b16 %v322, %v316
  %v473 = vpack.c.b16 %v323, %v317
  %v474 = vpack.c.b16 %v324, %v318
  %v475 = vpack.c.b16 %v325, %v319
  %v476 = vpack.c.b16 %v326, %v320
  %v477 = vpack.c.b16 %v327, %v321
  %v478 = vpack.c.b16 %v334, %v328
  %v479 = vpack.c.b16 %v335, %v329
  %v480 = vpack.c.b16 %v336, %v330
  %v481 = vpack.c.b16 %v337, %v331
  %v482 = vpack.c.b16 %v338, %v332
  %v483 = vpack.c.b16 %v339, %v333
  %v484 = vpack.c.b16 %v346, %v340
  %v485 = vpack.c.b16 %v347, %v341
  %v486 = vpack.c.b16 %v348, %v342
  %v487 = vpack.c.b16 %v349, %v343
  %v488 = vpack.c.b16 %v350, %v344
  %v489 = vpack.c.b16 %v351, %v345
  %v490 = vpack.c.b16 %v358, %v352
  %v491 = vpack.c.b16 %v359, %v353
  %v492 = vpack.c.b16 %v360, %v354
  %v493 = vpack.c.b16 %v361, %v355
  %v494 = vpack.c.b16 %v362, %v356
  %v495 = vpack.c.b16 %v363, %v357
  %v496 = vpack.c.b16 %v370, %v364
  %v497 = vpack.c.b16 %v371, %v365
  %v498 = vpack.c.b16 %v372, %v366
  %v499 = vpack.c.b16 %v373, %v367
  %v500 = vpack.c.b16 %v374, %v368
  %v501 = vpack.c.b16 %v375, %v369
  %v502 = vpack.c.b16 %v382, %v376
  %v503 = vpack.c.b16 %v383, %v377
  %v504 = vpack.c.b16 %v384, %v378
  %v505 = vpack.c.b16 %v385, %v379
  %v506 = vpack.c.b16 %v386, %v380
  %v507 = vpack.c.b16 %v387, %v381
  %v508 = vpack.c.b16 %v394, %v388
  %v509 = vpack.c.b16 %v395, %v389
  %v510 = vpack.c.b16 %v396, %v390
  %v511 = vpack.c.b16 %v397, %v391
  %v512 = vpack.c.b16 %v398, %v392
  %v513 = vpack.c.b16 %v399, %v393
  %v514 = vpack.c.b16 %v406, %v400
  %v515 = vpack.c.b16 %v407, %v401
  %v516 = vpack.c.b16 %v408, %v402
  %v517 = vpack.c.b16 %v409, %v403
  %v518 = vpack.c.b16 %v410, %v404
  %v519 = vpack.c.b16 %v411, %v405
  %v520 = vpack.c.b16 %v418, %v412
  %v521 = vpack.c.b16 %v419, %v413
  %v522 = vpack.c.b16 %v420, %v414
  %v523 = vpack.c.b16 %v421, %v415
  %v524 = vpack.c.b16 %v422, %v416
  %v525 = vpack.c.b16 %v423, %v417
  %v526 = vpack.c.b16 %v430, %v424
  %v527 = vpack.c.b16 %v431, %v425
  %v528 = vpack.c.b16 %v432, %v426
  %v529 = vpack.c.b16 %v433, %v427
  %v530 = vpack.c.b16 %v434, %v428
  %v531 = vpack.c.b16 %v435, %v429
  %628 = vmatprep.subr.bf16.mxu0 %v437
  %629 = vmatpush1.bf16.msra.mxu0 %v436
  %630 = vmatprep.subr.bf16.mxu0 %v443
  %631 = vmatpush1.bf16.msra.mxu0 %v442
  %632 = vmatprep.subr.bf16.mxu0 %v449
  %633 = vmatpush1.bf16.msra.mxu0 %v448
  %634 = vmatprep.subr.bf16.mxu0 %v455
  %635 = vmatpush1.bf16.msra.mxu0 %v454
  %636 = vmatprep.subr.bf16.mxu0 %v461
  %637 = vmatpush1.bf16.msra.mxu0 %v460
  %638 = vmatprep.subr.bf16.mxu0 %v467
  %639 = vmatpush1.bf16.msra.mxu0 %v466
  %640 = vmatprep.subr.bf16.mxu0 %v473
  %641 = vmatpush1.bf16.msra.mxu0 %v472
  %642 = vmatprep.subr.bf16.mxu0 %v479
  %643 = vmatpush1.bf16.msra.mxu0 %v478
  %644 = vmatprep.subr.bf16.mxu0 %v485
  %645 = vmatpush1.bf16.msra.mxu0 %v484
  %646 = vmatprep.subr.bf16.mxu0 %v491
  %647 = vmatpush1.bf16.msra.mxu0 %v490
  %648 = vmatprep.subr.bf16.mxu0 %v497
  %649 = vmatpush1.bf16.msra.mxu0 %v496
  %650 = vmatprep.subr.bf16.mxu0 %v503
  %651 = vmatpush1.bf16.msra.mxu0 %v502
  %652 = vmatprep.subr.bf16.mxu0 %v509
  %653 = vmatpush1.bf16.msra.mxu0 %v508
  %654 = vmatprep.subr.bf16.mxu0 %v515
  %655 = vmatpush1.bf16.msra.mxu0 %v514
  %656 = vmatprep.subr.bf16.mxu0 %v521
  %657 = vmatpush1.bf16.msra.mxu0 %v520
  %658 = vmatprep.subr.bf16.mxu0 %v527
  %659 = vmatpush1.bf16.msra.mxu0 %v526
  %660 = vmatprep.mubr.bf16.mxu0 %v19
  %661 = vmatmul.mubr.bf16.gmra.mrb[0].mxu0 %v18
  %v662 = vpop.f32.mrb[0].mxu0
  %v663 = vadd.f32 %v121, %v662
  %v664 = vpop.f32.mrb[0].mxu0
  %v665 = vadd.f32 %v125, %v664
  %v666 = vpop.f32.mrb[0].mxu0
  %v667 = vadd.f32 %v121, %v666
  %v668 = vpop.f32.mrb[0].mxu0
  %v669 = vadd.f32 %v125, %v668
  %670 = vdwg.mxu0
  %671 = vmatprep.subr.bf16.mxu0 %v439
  %672 = vmatpush1.bf16.msra.mxu0 %v438
  %673 = vmatprep.subr.bf16.mxu0 %v445
  %674 = vmatpush1.bf16.msra.mxu0 %v444
  %675 = vmatprep.subr.bf16.mxu0 %v451
  %676 = vmatpush1.bf16.msra.mxu0 %v450
  %677 = vmatprep.subr.bf16.mxu0 %v457
  %678 = vmatpush1.bf16.msra.mxu0 %v456
  %679 = vmatprep.subr.bf16.mxu0 %v463
  %680 = vmatpush1.bf16.msra.mxu0 %v462
  %681 = vmatprep.subr.bf16.mxu0 %v469
  %682 = vmatpush1.bf16.msra.mxu0 %v468
  %683 = vmatprep.subr.bf16.mxu0 %v475
  %684 = vmatpush1.bf16.msra.mxu0 %v474
  %685 = vmatprep.subr.bf16.mxu0 %v481
  %686 = vmatpush1.bf16.msra.mxu0 %v480
  %687 = vmatprep.subr.bf16.mxu0 %v487
  %688 = vmatpush1.bf16.msra.mxu0 %v486
  %689 = vmatprep.subr.bf16.mxu0 %v493
  %690 = vmatpush1.bf16.msra.mxu0 %v492
  %691 = vmatprep.subr.bf16.mxu0 %v499
  %692 = vmatpush1.bf16.msra.mxu0 %v498
  %693 = vmatprep.subr.bf16.mxu0 %v505
  %694 = vmatpush1.bf16.msra.mxu0 %v504
  %695 = vmatprep.subr.bf16.mxu0 %v511
  %696 = vmatpush1.bf16.msra.mxu0 %v510
  %697 = vmatprep.subr.bf16.mxu0 %v517
  %698 = vmatpush1.bf16.msra.mxu0 %v516
  %699 = vmatprep.subr.bf16.mxu0 %v523
  %700 = vmatpush1.bf16.msra.mxu0 %v522
  %701 = vmatprep.subr.bf16.mxu0 %v529
  %702 = vmatpush1.bf16.msra.mxu0 %v528
  %703 = vmatprep.mubr.bf16.mxu0 %v19
  %704 = vmatmul.mubr.bf16.gmra.mrb[0].mxu0 %v18
  %v705 = vpop.f32.mrb[0].mxu0
  %v706 = vadd.f32 %v129, %v705
  %v707 = vpop.f32.mrb[0].mxu0
  %v708 = vadd.f32 %v133, %v707
  %v709 = vpop.f32.mrb[0].mxu0
  %v710 = vadd.f32 %v129, %v709
  %v711 = vpop.f32.mrb[0].mxu0
  %v712 = vadd.f32 %v133, %v711
  %713 = vdwg.mxu0
  %714 = vmatprep.subr.bf16.mxu0 %v441
  %715 = vmatpush1.bf16.msra.mxu0 %v440
  %716 = vmatprep.subr.bf16.mxu0 %v447
  %717 = vmatpush1.bf16.msra.mxu0 %v446
  %718 = vmatprep.subr.bf16.mxu0 %v453
  %719 = vmatpush1.bf16.msra.mxu0 %v452
  %720 = vmatprep.subr.bf16.mxu0 %v459
  %721 = vmatpush1.bf16.msra.mxu0 %v458
  %722 = vmatprep.subr.bf16.mxu0 %v465
  %723 = vmatpush1.bf16.msra.mxu0 %v464
  %724 = vmatprep.subr.bf16.mxu0 %v471
  %725 = vmatpush1.bf16.msra.mxu0 %v470
  %726 = vmatprep.subr.bf16.mxu0 %v477
  %727 = vmatpush1.bf16.msra.mxu0 %v476
  %728 = vmatprep.subr.bf16.mxu0 %v483
  %729 = vmatpush1.bf16.msra.mxu0 %v482
  %730 = vmatprep.subr.bf16.mxu0 %v489
  %731 = vmatpush1.bf16.msra.mxu0 %v488
  %732 = vmatprep.subr.bf16.mxu0 %v495
  %733 = vmatpush1.bf16.msra.mxu0 %v494
  %734 = vmatprep.subr.bf16.mxu0 %v501
  %735 = vmatpush1.bf16.msra.mxu0 %v500
  %736 = vmatprep.subr.bf16.mxu0 %v507
  %737 = vmatpush1.bf16.msra.mxu0 %v506
  %738 = vmatprep.subr.bf16.mxu0 %v513
  %739 = vmatpush1.bf16.msra.mxu0 %v512
  %740 = vmatprep.subr.bf16.mxu0 %v519
  %741 = vmatpush1.bf16.msra.mxu0 %v518
  %742 = vmatprep.subr.bf16.mxu0 %v525
  %743 = vmatpush1.bf16.msra.mxu0 %v524
  %744 = vmatprep.subr.bf16.mxu0 %v531
  %745 = vmatpush1.bf16.msra.mxu0 %v530
  %746 = vmatprep.mubr.bf16.mxu0 %v19
  %747 = vmatmul.mubr.bf16.gmra.mrb[0].mxu0 %v18
  %v748 = vpop.f32.mrb[0].mxu0
  %v749 = vadd.f32 %v137, %v748
  %v750 = vpop.f32.mrb[0].mxu0
  %v751 = vadd.f32 %v141, %v750
  %v752 = vpop.f32.mrb[0].mxu0
  %v753 = vadd.f32 %v137, %v752
  %v754 = vpop.f32.mrb[0].mxu0
  %v755 = vadd.f32 %v141, %v754
  %756 = vdwg.mxu0
  %757 = vst [vmem:[%s3] sm:$0xff] %v663
  %758 = vst [vmem:[%s3 + $0x8] sm:$0xff] %v665
  %759 = vst [vmem:[%s3 + $0x10] sm:$0xff] %v706
  %760 = vst [vmem:[%s3 + $0x18] sm:$0xff] %v708
  %761 = vst [vmem:[%s3 + $0x20] sm:$0xff] %v749
  %762 = vst [vmem:[%s3 + $0x28] sm:$0xff] %v751
  %763 = vst [vmem:[%s3 + $0x30] sm:$0xff] %v667
  %764 = vst [vmem:[%s3 + $0x38] sm:$0xff] %v669
  %765 = vst [vmem:[%s3 + $0x40] sm:$0xff] %v710
  %766 = vst [vmem:[%s3 + $0x48] sm:$0xff] %v712
  %767 = vst [vmem:[%s3 + $0x50] sm:$0xff] %v753
  %768 = vst [vmem:[%s3 + $0x58] sm:$0xff] %v755
  // Predicated region
  $region14: #{trans_audio_forward.8} parent=0 // pred_check
    _
  $region15: #{trans_audio_forward.8} parent=0 // pred_check_branch
    %770 = sbr.rel (0) target = $region17
  $region16: #{trans_audio_forward.8} parent=0 // pred_region
    _
  $region17: #{trans_audio_forward.8} parent=0 // pred_fallthru
    _
  // Predicated region
  $region18: #{trans_audio_forward.8} parent=0 // pred_check
    _
  $region19: #{trans_audio_forward.8} parent=0 // pred_check_branch
    %772 = sbr.rel (0) target = $region21
  $region20: #{trans_audio_forward.8} parent=0 // pred_region
    _
  $region21: #{trans_audio_forward.8} parent=0 // pred_fallthru
    _

// kernel: trans_audio_forward.10
$region0: #{trans_audio_forward.10}
  #allocation0 [shape = 'u32[]', space=smem, size = 0x4, offset = 0x4, fixed_abs, tag = 'smem constant byte address 0x4 - core index']
  #allocation1 [shape = 'u32[144,128]{1,0:T(1,128)}', space=vmem, size = 0x12000, scoped, tag = 'internal scratch']
  %s0 = inlined_call_operand.vmem [shape: f32[16,256], index: 0, kind: input, shape index: {}]
  %s1 = inlined_call_operand.vmem [shape: f32[16,256], index: 1, kind: input, shape index: {}]
  %s2 = inlined_call_operand.vmem [shape: bf16[256,256], index: 2, kind: input, shape index: {}]
  %s3 = inlined_call_operand.vmem [shape: f32[1,256], index: 3, kind: input, shape index: {}]
  %s4 = inlined_call_operand.vmem [shape: f32[1,256], index: 4, kind: input, shape index: {}]
  %s5 = inlined_call_operand.vmem [shape: f32[1,256], index: 5, kind: input, shape index: {}]
  %s6 = inlined_call_operand.vmem [shape: bf16[256,64], index: 6, kind: input, shape index: {}]
  %s7 = inlined_call_operand.vmem [shape: f32[1,64], index: 7, kind: input, shape index: {}]
  %s8 = inlined_call_operand.vmem [shape: bf16[64,256], index: 8, kind: input, shape index: {}]
  %s9 = inlined_call_operand.vmem [shape: f32[1,256], index: 9, kind: input, shape index: {}]
  %s10 = inlined_call_operand.vmem [shape: f32[1,256], index: 10, kind: input, shape index: {}]
  %s11 = inlined_call_operand.vmem [shape: f32[1,256], index: 11, kind: input, shape index: {}]
  %s12 = inlined_call_operand.vmem [shape: f32[16,256], index: 12, kind: output, shape index: {}]
  %s13 = sld [smem:[#allocation0]]
  $region58: #{trans_audio_forward.10} parent=0
    _
  %s15 = ssub.s32 1, %s13
  %s16 = scalar_select 0, %s15, %s13
  // Predicated region
  $region2: #{trans_audio_forward.10} parent=0 // pred_check
    _
  $region3: #{trans_audio_forward.10} parent=0 // pred_check_branch
    %18 = sbr.rel (0) target = $region5
  $region4: #{trans_audio_forward.10} parent=0 // pred_region
    _
  $region5: #{trans_audio_forward.10} parent=0 // pred_fallthru
    _
  // Predicated region
  $region6: #{trans_audio_forward.10} parent=0 // pred_check
    _
  $region7: #{trans_audio_forward.10} parent=0 // pred_check_branch
    %20 = sbr.rel (0) target = $region9
  $region8: #{trans_audio_forward.10} parent=0 // pred_region
    _
  $region9: #{trans_audio_forward.10} parent=0 // pred_fallthru
    _
  // Predicated region
  $region10: #{trans_audio_forward.10} parent=0 // pred_check
    _
  $region11: #{trans_audio_forward.10} parent=0 // pred_check_branch
    %22 = sbr.rel (0) target = $region13
  $region12: #{trans_audio_forward.10} parent=0 // pred_region
    _
  $region13: #{trans_audio_forward.10} parent=0 // pred_fallthru
    _
  // Predicated region
  $region14: #{trans_audio_forward.10} parent=0 // pred_check
    _
  $region15: #{trans_audio_forward.10} parent=0 // pred_check_branch
    %24 = sbr.rel (0) target = $region17
  $region16: #{trans_audio_forward.10} parent=0 // pred_region
    _
  $region17: #{trans_audio_forward.10} parent=0 // pred_fallthru
    _
  // Predicated region
  $region18: #{trans_audio_forward.10} parent=0 // pred_check
    _
  $region19: #{trans_audio_forward.10} parent=0 // pred_check_branch
    %26 = sbr.rel (0) target = $region21
  $region20: #{trans_audio_forward.10} parent=0 // pred_region
    _
  $region21: #{trans_audio_forward.10} parent=0 // pred_fallthru
    _
  // Predicated region
  $region22: #{trans_audio_forward.10} parent=0 // pred_check
    _
  $region23: #{trans_audio_forward.10} parent=0 // pred_check_branch
    %28 = sbr.rel (0) target = $region25
  $region24: #{trans_audio_forward.10} parent=0 // pred_region
    _
  $region25: #{trans_audio_forward.10} parent=0 // pred_fallthru
    _
  // Predicated region
  $region26: #{trans_audio_forward.10} parent=0 // pred_check
    _
  $region27: #{trans_audio_forward.10} parent=0 // pred_check_branch
    %30 = sbr.rel (0) target = $region29
  $region28: #{trans_audio_forward.10} parent=0 // pred_region
    _
  $region29: #{trans_audio_forward.10} parent=0 // pred_fallthru
    _
  // Predicated region
  $region30: #{trans_audio_forward.10} parent=0 // pred_check
    _
  $region31: #{trans_audio_forward.10} parent=0 // pred_check_branch
    %32 = sbr.rel (0) target = $region33
  $region32: #{trans_audio_forward.10} parent=0 // pred_region
    _
  $region33: #{trans_audio_forward.10} parent=0 // pred_fallthru
    _
  // Predicated region
  $region34: #{trans_audio_forward.10} parent=0 // pred_check
    _
  $region35: #{trans_audio_forward.10} parent=0 // pred_check_branch
    %34 = sbr.rel (0) target = $region37
  $region36: #{trans_audio_forward.10} parent=0 // pred_region
    _
  $region37: #{trans_audio_forward.10} parent=0 // pred_fallthru
    _
  // Predicated region
  $region38: #{trans_audio_forward.10} parent=0 // pred_check
    _
  $region39: #{trans_audio_forward.10} parent=0 // pred_check_branch
    %36 = sbr.rel (0) target = $region41
  $region40: #{trans_audio_forward.10} parent=0 // pred_region
    _
  $region41: #{trans_audio_forward.10} parent=0 // pred_fallthru
    _
  // Predicated region
  $region42: #{trans_audio_forward.10} parent=0 // pred_check
    _
  $region43: #{trans_audio_forward.10} parent=0 // pred_check_branch
    %38 = sbr.rel (0) target = $region45
  $region44: #{trans_audio_forward.10} parent=0 // pred_region
    _
  $region45: #{trans_audio_forward.10} parent=0 // pred_fallthru
    _
  // Predicated region
  $region46: #{trans_audio_forward.10} parent=0 // pred_check
    _
  $region47: #{trans_audio_forward.10} parent=0 // pred_check_branch
    %40 = sbr.rel (0) target = $region49
  $region48: #{trans_audio_forward.10} parent=0 // pred_region
    _
  $region49: #{trans_audio_forward.10} parent=0 // pred_fallthru
    _
  %v42 = vld [vmem:[%s1] sm:$0xff]
  %v43 = vld [vmem:[%s1 + $0x8] sm:$0xff]
  %v44 = vld [vmem:[%s1 + $0x10] sm:$0xff]
  %v45 = vld [vmem:[%s1 + $0x18] sm:$0xff]
  %v46 = vld [vmem:[%s0] sm:$0xff]
  %v47 = vld [vmem:[%s0 + $0x8] sm:$0xff]
  %v48 = vld [vmem:[%s0 + $0x10] sm:$0xff]
  %v49 = vld [vmem:[%s0 + $0x18] sm:$0xff]
  %v50 = vpack.c.bf16 %v48, %v46
  %v51 = vpack.c.bf16 %v49, %v47
  %v52 = vld [vmem:[%s2] sm:$0xff]
  %v53 = vld [vmem:[%s2 + $0x8] sm:$0xff]
  %v54 = vld [vmem:[%s2 + $0x10] sm:$0xff]
  %v55 = vld [vmem:[%s2 + $0x18] sm:$0xff]
  %v56 = vld [vmem:[%s2 + $0x20] sm:$0xff]
  %v57 = vld [vmem:[%s2 + $0x28] sm:$0xff]
  %v58 = vld [vmem:[%s2 + $0x30] sm:$0xff]
  %v59 = vld [vmem:[%s2 + $0x38] sm:$0xff]
  %v60 = vld [vmem:[%s2 + $0x40] sm:$0xff]
  %v61 = vld [vmem:[%s2 + $0x48] sm:$0xff]
  %v62 = vld [vmem:[%s2 + $0x50] sm:$0xff]
  %v63 = vld [vmem:[%s2 + $0x58] sm:$0xff]
  %v64 = vld [vmem:[%s2 + $0x60] sm:$0xff]
  %v65 = vld [vmem:[%s2 + $0x68] sm:$0xff]
  %v66 = vld [vmem:[%s2 + $0x70] sm:$0xff]
  %v67 = vld [vmem:[%s2 + $0x78] sm:$0xff]
  %v68 = vld [vmem:[%s2 + $0x80] sm:$0xff]
  %v69 = vld [vmem:[%s2 + $0x88] sm:$0xff]
  %v70 = vld [vmem:[%s2 + $0x90] sm:$0xff]
  %v71 = vld [vmem:[%s2 + $0x98] sm:$0xff]
  %v72 = vld [vmem:[%s2 + $0xa0] sm:$0xff]
  %v73 = vld [vmem:[%s2 + $0xa8] sm:$0xff]
  %v74 = vld [vmem:[%s2 + $0xb0] sm:$0xff]
  %v75 = vld [vmem:[%s2 + $0xb8] sm:$0xff]
  %v76 = vld [vmem:[%s2 + $0xc0] sm:$0xff]
  %v77 = vld [vmem:[%s2 + $0xc8] sm:$0xff]
  %v78 = vld [vmem:[%s2 + $0xd0] sm:$0xff]
  %v79 = vld [vmem:[%s2 + $0xd8] sm:$0xff]
  %v80 = vld [vmem:[%s2 + $0xe0] sm:$0xff]
  %v81 = vld [vmem:[%s2 + $0xe8] sm:$0xff]
  %v82 = vld [vmem:[%s2 + $0xf0] sm:$0xff]
  %v83 = vld [vmem:[%s2 + $0xf8] sm:$0xff]
  %v84 = vld [vmem:[%s3] sm:$0x3]
  %v86 = vlaneseq
  %v87 = vshrl.u32 %v86, 7
  %v88 = vsub.s32 0, %v87
  %v89 = vrot.slane %v84, %v88
  %v90 = vlaneseq
  %v91 = vshrl.u32 %v90, 7
  %v92 = vsub.s32 1, %v91
  %v93 = vrot.slane %v84, %v92
  %v128 = vunpack.c.l.b16 %v52
  %v129 = vunpack.c.h.b16 %v52
  %v130 = vunpack.c.l.b16 %v53
  %v131 = vunpack.c.h.b16 %v53
  %v132 = vunpack.c.l.b16 %v54
  %v133 = vunpack.c.h.b16 %v54
  %v134 = vunpack.c.l.b16 %v55
  %v135 = vunpack.c.h.b16 %v55
  %v136 = vunpack.c.l.b16 %v56
  %v137 = vunpack.c.h.b16 %v56
  %v138 = vunpack.c.l.b16 %v57
  %v139 = vunpack.c.h.b16 %v57
  %v140 = vunpack.c.l.b16 %v58
  %v141 = vunpack.c.h.b16 %v58
  %v142 = vunpack.c.l.b16 %v59
  %v143 = vunpack.c.h.b16 %v59
  %v144 = vunpack.c.l.b16 %v60
  %v145 = vunpack.c.h.b16 %v60
  %v146 = vunpack.c.l.b16 %v61
  %v147 = vunpack.c.h.b16 %v61
  %v148 = vunpack.c.l.b16 %v62
  %v149 = vunpack.c.h.b16 %v62
  %v150 = vunpack.c.l.b16 %v63
  %v151 = vunpack.c.h.b16 %v63
  %v152 = vunpack.c.l.b16 %v64
  %v153 = vunpack.c.h.b16 %v64
  %v154 = vunpack.c.l.b16 %v65
  %v155 = vunpack.c.h.b16 %v65
  %v156 = vunpack.c.l.b16 %v66
  %v157 = vunpack.c.h.b16 %v66
  %v158 = vunpack.c.l.b16 %v67
  %v159 = vunpack.c.h.b16 %v67
  %v160 = vunpack.c.l.b16 %v68
  %v161 = vunpack.c.h.b16 %v68
  %v162 = vunpack.c.l.b16 %v69
  %v163 = vunpack.c.h.b16 %v69
  %v164 = vunpack.c.l.b16 %v70
  %v165 = vunpack.c.h.b16 %v70
  %v166 = vunpack.c.l.b16 %v71
  %v167 = vunpack.c.h.b16 %v71
  %v168 = vunpack.c.l.b16 %v72
  %v169 = vunpack.c.h.b16 %v72
  %v170 = vunpack.c.l.b16 %v73
  %v171 = vunpack.c.h.b16 %v73
  %v172 = vunpack.c.l.b16 %v74
  %v173 = vunpack.c.h.b16 %v74
  %v174 = vunpack.c.l.b16 %v75
  %v175 = vunpack.c.h.b16 %v75
  %v176 = vunpack.c.l.b16 %v76
  %v177 = vunpack.c.h.b16 %v76
  %v178 = vunpack.c.l.b16 %v77
  %v179 = vunpack.c.h.b16 %v77
  %v180 = vunpack.c.l.b16 %v78
  %v181 = vunpack.c.h.b16 %v78
  %v182 = vunpack.c.l.b16 %v79
  %v183 = vunpack.c.h.b16 %v79
  %v184 = vunpack.c.l.b16 %v80
  %v185 = vunpack.c.h.b16 %v80
  %v186 = vunpack.c.l.b16 %v81
  %v187 = vunpack.c.h.b16 %v81
  %v188 = vunpack.c.l.b16 %v82
  %v189 = vunpack.c.h.b16 %v82
  %v190 = vunpack.c.l.b16 %v83
  %v191 = vunpack.c.h.b16 %v83
  %v192 = vpack.c.b16 %v130, %v128
  %v193 = vpack.c.b16 %v131, %v129
  %v194 = vpack.c.b16 %v134, %v132
  %v195 = vpack.c.b16 %v135, %v133
  %v196 = vpack.c.b16 %v138, %v136
  %v197 = vpack.c.b16 %v139, %v137
  %v198 = vpack.c.b16 %v142, %v140
  %v199 = vpack.c.b16 %v143, %v141
  %v200 = vpack.c.b16 %v146, %v144
  %v201 = vpack.c.b16 %v147, %v145
  %v202 = vpack.c.b16 %v150, %v148
  %v203 = vpack.c.b16 %v151, %v149
  %v204 = vpack.c.b16 %v154, %v152
  %v205 = vpack.c.b16 %v155, %v153
  %v206 = vpack.c.b16 %v158, %v156
  %v207 = vpack.c.b16 %v159, %v157
  %v208 = vpack.c.b16 %v162, %v160
  %v209 = vpack.c.b16 %v163, %v161
  %v210 = vpack.c.b16 %v166, %v164
  %v211 = vpack.c.b16 %v167, %v165
  %v212 = vpack.c.b16 %v170, %v168
  %v213 = vpack.c.b16 %v171, %v169
  %v214 = vpack.c.b16 %v174, %v172
  %v215 = vpack.c.b16 %v175, %v173
  %v216 = vpack.c.b16 %v178, %v176
  %v217 = vpack.c.b16 %v179, %v177
  %v218 = vpack.c.b16 %v182, %v180
  %v219 = vpack.c.b16 %v183, %v181
  %v220 = vpack.c.b16 %v186, %v184
  %v221 = vpack.c.b16 %v187, %v185
  %v222 = vpack.c.b16 %v190, %v188
  %v223 = vpack.c.b16 %v191, %v189
  %256 = vmatprep.subr.bf16.mxu0 %v193
  %257 = vmatpush1.bf16.msra.mxu0 %v192
  %258 = vmatprep.subr.bf16.mxu0 %v195
  %259 = vmatpush1.bf16.msra.mxu0 %v194
  %260 = vmatprep.subr.bf16.mxu0 %v197
  %261 = vmatpush1.bf16.msra.mxu0 %v196
  %262 = vmatprep.subr.bf16.mxu0 %v199
  %263 = vmatpush1.bf16.msra.mxu0 %v198
  %264 = vmatprep.subr.bf16.mxu0 %v201
  %265 = vmatpush1.bf16.msra.mxu0 %v200
  %266 = vmatprep.subr.bf16.mxu0 %v203
  %267 = vmatpush1.bf16.msra.mxu0 %v202
  %268 = vmatprep.subr.bf16.mxu0 %v205
  %269 = vmatpush1.bf16.msra.mxu0 %v204
  %270 = vmatprep.subr.bf16.mxu0 %v207
  %271 = vmatpush1.bf16.msra.mxu0 %v206
  %272 = vmatprep.subr.bf16.mxu0 %v209
  %273 = vmatpush1.bf16.msra.mxu0 %v208
  %274 = vmatprep.subr.bf16.mxu0 %v211
  %275 = vmatpush1.bf16.msra.mxu0 %v210
  %276 = vmatprep.subr.bf16.mxu0 %v213
  %277 = vmatpush1.bf16.msra.mxu0 %v212
  %278 = vmatprep.subr.bf16.mxu0 %v215
  %279 = vmatpush1.bf16.msra.mxu0 %v214
  %280 = vmatprep.subr.bf16.mxu0 %v217
  %281 = vmatpush1.bf16.msra.mxu0 %v216
  %282 = vmatprep.subr.bf16.mxu0 %v219
  %283 = vmatpush1.bf16.msra.mxu0 %v218
  %284 = vmatprep.subr.bf16.mxu0 %v221
  %285 = vmatpush1.bf16.msra.mxu0 %v220
  %286 = vmatprep.subr.bf16.mxu0 %v223
  %287 = vmatpush1.bf16.msra.mxu0 %v222
  %288 = vmatprep.mubr.bf16.mxu0 %v51
  %289 = vmatmul.mubr.bf16.gmra.mrb[0].mxu0 %v50
  %v290 = vpop.f32.mrb[0].mxu0
  %v291 = vadd.f32 %v89, %v290
  %v292 = vpop.f32.mrb[0].mxu0
  %v293 = vadd.f32 %v93, %v292
  %v294 = vpop.f32.mrb[0].mxu0
  %v295 = vadd.f32 %v89, %v294
  %v296 = vpop.f32.mrb[0].mxu0
  %v297 = vadd.f32 %v93, %v296
  %298 = vdwg.mxu0
  %v299 = vadd.f32 %v42, %v291
  %v300 = vadd.f32 %v43, %v293
  %v301 = vadd.f32 %v44, %v295
  %v302 = vadd.f32 %v45, %v297
  %v303 = vld [vmem:[%s4] sm:$0x3]
  %v304 = vld [vmem:[%s5] sm:$0x3]
  %v305 = vadd.f32 %v299, %v300
  %306 = vadd.xlane.f32.xlu0 %v305
  %v307 = vpop.xlane.xlu0 %306
  %v308 = vadd.f32 %v301, %v302
  %309 = vadd.xlane.f32.xlu0 %v308
  %v310 = vpop.xlane.xlu0 %309
  %v311 = vrcp.pop 256.0
  %v312 = vmul.f32 %v307, %v311
  %v313 = vmul.f32 %v310, %v311
  %v314 = vsub.f32 %v299, %v312
  %v315 = vsub.f32 %v300, %v312
  %v316 = vsub.f32 %v301, %v313
  %v317 = vsub.f32 %v302, %v313
  %v318 = vmul.f32 %v314, %v314
  %v319 = vmul.f32 %v315, %v315
  %v320 = vmul.f32 %v316, %v316
  %v321 = vmul.f32 %v317, %v317
  %v322 = vadd.f32 %v318, %v319
  %323 = vadd.xlane.f32.xlu0 %v322
  %v324 = vpop.xlane.xlu0 %323
  %v325 = vadd.f32 %v320, %v321
  %326 = vadd.xlane.f32.xlu0 %v325
  %v327 = vpop.xlane.xlu0 %326
  %v328 = vmul.f32 %v324, %v311
  %v329 = vmul.f32 %v327, %v311
  %v330 = vadd.f32 %v328, 1e-05
  %v331 = vadd.f32 %v329, 1e-05
  %v332 = vrsqrt.pop %v330
  %v333 = vrsqrt.pop %v331
  %v334 = vmul.f32 %v314, %v332
  %v335 = vmul.f32 %v315, %v332
  %v336 = vmul.f32 %v316, %v333
  %v337 = vmul.f32 %v317, %v333
  %v339 = vlaneseq
  %v340 = vshrl.u32 %v339, 7
  %v341 = vsub.s32 0, %v340
  %v342 = vrot.slane %v303, %v341
  %v343 = vlaneseq
  %v344 = vshrl.u32 %v343, 7
  %v345 = vsub.s32 1, %v344
  %v346 = vrot.slane %v303, %v345
  %v349 = vmul.f32 %v334, %v342
  %v350 = vmul.f32 %v335, %v346
  %v351 = vmul.f32 %v336, %v342
  %v352 = vmul.f32 %v337, %v346
  %v354 = vlaneseq
  %v355 = vshrl.u32 %v354, 7
  %v356 = vsub.s32 0, %v355
  %v357 = vrot.slane %v304, %v356
  %v358 = vlaneseq
  %v359 = vshrl.u32 %v358, 7
  %v360 = vsub.s32 1, %v359
  %v361 = vrot.slane %v304, %v360
  %v364 = vadd.f32 %v349, %v357
  %v365 = vadd.f32 %v350, %v361
  %v366 = vadd.f32 %v351, %v357
  %v367 = vadd.f32 %v352, %v361
  %v368 = vpack.c.bf16 %v366, %v364
  %v369 = vpack.c.bf16 %v367, %v365
  %v370 = vld [vmem:[%s6] sm:$0xf]
  %v371 = vld [vmem:[%s6 + $0x4] sm:$0xf]
  %v372 = vld [vmem:[%s6 + $0x8] sm:$0xf]
  %v373 = vld [vmem:[%s6 + $0xc] sm:$0xf]
  %v374 = vld [vmem:[%s6 + $0x10] sm:$0xf]
  %v375 = vld [vmem:[%s6 + $0x14] sm:$0xf]
  %v376 = vld [vmem:[%s6 + $0x18] sm:$0xf]
  %v377 = vld [vmem:[%s6 + $0x1c] sm:$0xf]
  %v378 = vld [vmem:[%s6 + $0x20] sm:$0xf]
  %v379 = vld [vmem:[%s6 + $0x24] sm:$0xf]
  %v380 = vld [vmem:[%s6 + $0x28] sm:$0xf]
  %v381 = vld [vmem:[%s6 + $0x2c] sm:$0xf]
  %v382 = vld [vmem:[%s6 + $0x30] sm:$0xf]
  %v383 = vld [vmem:[%s6 + $0x34] sm:$0xf]
  %v384 = vld [vmem:[%s6 + $0x38] sm:$0xf]
  %v385 = vld [vmem:[%s6 + $0x3c] sm:$0xf]
  %v386 = vld [vmem:[%s6 + $0x40] sm:$0xf]
  %v387 = vld [vmem:[%s6 + $0x44] sm:$0xf]
  %v388 = vld [vmem:[%s6 + $0x48] sm:$0xf]
  %v389 = vld [vmem:[%s6 + $0x4c] sm:$0xf]
  %v390 = vld [vmem:[%s6 + $0x50] sm:$0xf]
  %v391 = vld [vmem:[%s6 + $0x54] sm:$0xf]
  %v392 = vld [vmem:[%s6 + $0x58] sm:$0xf]
  %v393 = vld [vmem:[%s6 + $0x5c] sm:$0xf]
  %v394 = vld [vmem:[%s6 + $0x60] sm:$0xf]
  %v395 = vld [vmem:[%s6 + $0x64] sm:$0xf]
  %v396 = vld [vmem:[%s6 + $0x68] sm:$0xf]
  %v397 = vld [vmem:[%s6 + $0x6c] sm:$0xf]
  %v398 = vld [vmem:[%s6 + $0x70] sm:$0xf]
  %v399 = vld [vmem:[%s6 + $0x74] sm:$0xf]
  %v400 = vld [vmem:[%s6 + $0x78] sm:$0xf]
  %v401 = vld [vmem:[%s6 + $0x7c] sm:$0xf]
  %v402 = vld [vmem:[%s7] sm:$0x1]
  %v404 = vlaneseq
  %v405 = vshrl.u32 %v404, 7
  %v406 = vsub.s32 0, %v405
  %v407 = vrot.slane %v402, %v406
  %v441 = vunpack.c.l.b16 %v370
  %v442 = vunpack.c.l.b16 %v371
  %v443 = vunpack.c.l.b16 %v372
  %v444 = vunpack.c.l.b16 %v373
  %v445 = vunpack.c.l.b16 %v374
  %v446 = vunpack.c.l.b16 %v375
  %v447 = vunpack.c.l.b16 %v376
  %v448 = vunpack.c.l.b16 %v377
  %v449 = vunpack.c.l.b16 %v378
  %v450 = vunpack.c.l.b16 %v379
  %v451 = vunpack.c.l.b16 %v380
  %v452 = vunpack.c.l.b16 %v381
  %v453 = vunpack.c.l.b16 %v382
  %v454 = vunpack.c.l.b16 %v383
  %v455 = vunpack.c.l.b16 %v384
  %v456 = vunpack.c.l.b16 %v385
  %v457 = vunpack.c.l.b16 %v386
  %v458 = vunpack.c.l.b16 %v387
  %v459 = vunpack.c.l.b16 %v388
  %v460 = vunpack.c.l.b16 %v389
  %v461 = vunpack.c.l.b16 %v390
  %v462 = vunpack.c.l.b16 %v391
  %v463 = vunpack.c.l.b16 %v392
  %v464 = vunpack.c.l.b16 %v393
  %v465 = vunpack.c.l.b16 %v394
  %v466 = vunpack.c.l.b16 %v395
  %v467 = vunpack.c.l.b16 %v396
  %v468 = vunpack.c.l.b16 %v397
  %v469 = vunpack.c.l.b16 %v398
  %v470 = vunpack.c.l.b16 %v399
  %v471 = vunpack.c.l.b16 %v400
  %v472 = vunpack.c.l.b16 %v401
  %v473 = vpack.c.b16 %v442, %v441
  %v474 = vpack.c.b16 %v444, %v443
  %v475 = vpack.c.b16 %v446, %v445
  %v476 = vpack.c.b16 %v448, %v447
  %v477 = vpack.c.b16 %v450, %v449
  %v478 = vpack.c.b16 %v452, %v451
  %v479 = vpack.c.b16 %v454, %v453
  %v480 = vpack.c.b16 %v456, %v455
  %v481 = vpack.c.b16 %v458, %v457
  %v482 = vpack.c.b16 %v460, %v459
  %v483 = vpack.c.b16 %v462, %v461
  %v484 = vpack.c.b16 %v464, %v463
  %v485 = vpack.c.b16 %v466, %v465
  %v486 = vpack.c.b16 %v468, %v467
  %v487 = vpack.c.b16 %v470, %v469
  %v488 = vpack.c.b16 %v472, %v471
  %505 = vmatprep.subr.bf16.mxu0 0
  %506 = vmatpush1.bf16.msra.mxu0 %v473
  %507 = vmatprep.subr.bf16.mxu0 0
  %508 = vmatpush1.bf16.msra.mxu0 %v474
  %509 = vmatprep.subr.bf16.mxu0 0
  %510 = vmatpush1.bf16.msra.mxu0 %v475
  %511 = vmatprep.subr.bf16.mxu0 0
  %512 = vmatpush1.bf16.msra.mxu0 %v476
  %513 = vmatprep.subr.bf16.mxu0 0
  %514 = vmatpush1.bf16.msra.mxu0 %v477
  %515 = vmatprep.subr.bf16.mxu0 0
  %516 = vmatpush1.bf16.msra.mxu0 %v478
  %517 = vmatprep.subr.bf16.mxu0 0
  %518 = vmatpush1.bf16.msra.mxu0 %v479
  %519 = vmatprep.subr.bf16.mxu0 0
  %520 = vmatpush1.bf16.msra.mxu0 %v480
  %521 = vmatprep.subr.bf16.mxu0 0
  %522 = vmatpush1.bf16.msra.mxu0 %v481
  %523 = vmatprep.subr.bf16.mxu0 0
  %524 = vmatpush1.bf16.msra.mxu0 %v482
  %525 = vmatprep.subr.bf16.mxu0 0
  %526 = vmatpush1.bf16.msra.mxu0 %v483
  %527 = vmatprep.subr.bf16.mxu0 0
  %528 = vmatpush1.bf16.msra.mxu0 %v484
  %529 = vmatprep.subr.bf16.mxu0 0
  %530 = vmatpush1.bf16.msra.mxu0 %v485
  %531 = vmatprep.subr.bf16.mxu0 0
  %532 = vmatpush1.bf16.msra.mxu0 %v486
  %533 = vmatprep.subr.bf16.mxu0 0
  %534 = vmatpush1.bf16.msra.mxu0 %v487
  %535 = vmatprep.subr.bf16.mxu0 0
  %536 = vmatpush1.bf16.msra.mxu0 %v488
  %537 = vmatprep.mubr.bf16.mxu0 %v369
  %538 = vmatmul.mubr.bf16.gmra.mrb[0].mxu0 %v368
  %v539 = vpop.f32.mrb[0].mxu0
  %v540 = vadd.f32 %v407, %v539
  %v541 = vpop.f32.mrb[0].mxu0
  %v542 = vpop.f32.mrb[0].mxu0
  %v543 = vadd.f32 %v407, %v542
  %v544 = vpop.f32.mrb[0].mxu0
  %545 = vdwg.mxu0
  %v546 = vmax.f32 %v540, 0.0
  %v547 = vmax.f32 %v543, 0.0
  %v548 = vpack.c.bf16 %v547, %v546
  %v549 = vld [vmem:[%s8] sm:$0xff]
  %v550 = vld [vmem:[%s8 + $0x8] sm:$0xff]
  %v551 = vld [vmem:[%s8 + $0x10] sm:$0xff]
  %v552 = vld [vmem:[%s8 + $0x18] sm:$0xff]
  %v553 = vld [vmem:[%s8 + $0x20] sm:$0xff]
  %v554 = vld [vmem:[%s8 + $0x28] sm:$0xff]
  %v555 = vld [vmem:[%s8 + $0x30] sm:$0xff]
  %v556 = vld [vmem:[%s8 + $0x38] sm:$0xff]
  %v557 = vld [vmem:[%s9] sm:$0x3]
  %v559 = vlaneseq
  %v560 = vshrl.u32 %v559, 7
  %v561 = vsub.s32 0, %v560
  %v562 = vrot.slane %v557, %v561
  %v563 = vlaneseq
  %v564 = vshrl.u32 %v563, 7
  %v565 = vsub.s32 1, %v564
  %v566 = vrot.slane %v557, %v565
  %v577 = vunpack.c.l.b16 %v549
  %v578 = vunpack.c.h.b16 %v549
  %v579 = vunpack.c.l.b16 %v550
  %v580 = vunpack.c.h.b16 %v550
  %v581 = vunpack.c.l.b16 %v551
  %v582 = vunpack.c.h.b16 %v551
  %v583 = vunpack.c.l.b16 %v552
  %v584 = vunpack.c.h.b16 %v552
  %v585 = vunpack.c.l.b16 %v553
  %v586 = vunpack.c.h.b16 %v553
  %v587 = vunpack.c.l.b16 %v554
  %v588 = vunpack.c.h.b16 %v554
  %v589 = vunpack.c.l.b16 %v555
  %v590 = vunpack.c.h.b16 %v555
  %v591 = vunpack.c.l.b16 %v556
  %v592 = vunpack.c.h.b16 %v556
  %v593 = vpack.c.b16 %v579, %v577
  %v594 = vpack.c.b16 %v580, %v578
  %v595 = vpack.c.b16 %v583, %v581
  %v596 = vpack.c.b16 %v584, %v582
  %v597 = vpack.c.b16 %v587, %v585
  %v598 = vpack.c.b16 %v588, %v586
  %v599 = vpack.c.b16 %v591, %v589
  %v600 = vpack.c.b16 %v592, %v590
  %vm609 = vcmask 523264
  %v611 = vsel %vm609, %v548, 0
  %613 = vmatprep.subr.bf16.mxu0 %v594
  %614 = vmatpush1.bf16.msra.mxu0 %v593
  %615 = vmatprep.subr.bf16.mxu0 %v596
  %616 = vmatpush1.bf16.msra.mxu0 %v595
  %617 = vmatprep.subr.bf16.mxu0 %v598
  %618 = vmatpush1.bf16.msra.mxu0 %v597
  %619 = vmatprep.subr.bf16.mxu0 %v600
  %620 = vmatpush1.bf16.msra.mxu0 %v599
  %621 = vmatprep.subr.bf16.mxu0 0
  %622 = vmatpush1.bf16.msra.mxu0 0
  %623 = vmatprep.subr.bf16.mxu0 0
  %624 = vmatpush1.bf16.msra.mxu0 0
  %625 = vmatprep.subr.bf16.mxu0 0
  %626 = vmatpush1.bf16.msra.mxu0 0
  %627 = vmatprep.subr.bf16.mxu0 0
  %628 = vmatpush1.bf16.msra.mxu0 0
  %629 = vmatprep.subr.bf16.mxu0 0
  %630 = vmatpush1.bf16.msra.mxu0 0
  %631 = vmatprep.subr.bf16.mxu0 0
  %632 = vmatpush1.bf16.msra.mxu0 0
  %633 = vmatprep.subr.bf16.mxu0 0
  %634 = vmatpush1.bf16.msra.mxu0 0
  %635 = vmatprep.subr.bf16.mxu0 0
  %636 = vmatpush1.bf16.msra.mxu0 0
  %637 = vmatprep.subr.bf16.mxu0 0
  %638 = vmatpush1.bf16.msra.mxu0 0
  %639 = vmatprep.subr.bf16.mxu0 0
  %640 = vmatpush1.bf16.msra.mxu0 0
  %641 = vmatprep.subr.bf16.mxu0 0
  %642 = vmatpush1.bf16.msra.mxu0 0
  %643 = vmatprep.subr.bf16.mxu0 0
  %644 = vmatpush1.bf16.msra.mxu0 0
  %645 = vmatprep.mubr.bf16.mxu0 0
  %646 = vmatmul.mubr.bf16.gmra.mrb[0].mxu0 %v611
  %v647 = vpop.f32.mrb[0].mxu0
  %v648 = vadd.f32 %v562, %v647
  %v649 = vpop.f32.mrb[0].mxu0
  %v650 = vadd.f32 %v566, %v649
  %v651 = vpop.f32.mrb[0].mxu0
  %v652 = vadd.f32 %v562, %v651
  %v653 = vpop.f32.mrb[0].mxu0
  %v654 = vadd.f32 %v566, %v653
  %655 = vdwg.mxu0
  %v656 = vadd.f32 %v364, %v648
  %v657 = vadd.f32 %v365, %v650
  %v658 = vadd.f32 %v366, %v652
  %v659 = vadd.f32 %v367, %v654
  %v660 = vld [vmem:[%s10] sm:$0x3]
  %v661 = vld [vmem:[%s11] sm:$0x3]
  %v662 = vadd.f32 %v656, %v657
  %663 = vadd.xlane.f32.xlu0 %v662
  %v664 = vpop.xlane.xlu0 %663
  %v665 = vadd.f32 %v658, %v659
  %666 = vadd.xlane.f32.xlu0 %v665
  %v667 = vpop.xlane.xlu0 %666
  %v668 = vmul.f32 %v664, %v311
  %v669 = vmul.f32 %v667, %v311
  %v670 = vsub.f32 %v656, %v668
  %v671 = vsub.f32 %v657, %v668
  %v672 = vsub.f32 %v658, %v669
  %v673 = vsub.f32 %v659, %v669
  %v674 = vmul.f32 %v670, %v670
  %v675 = vmul.f32 %v671, %v671
  %v676 = vmul.f32 %v672, %v672
  %v677 = vmul.f32 %v673, %v673
  %v678 = vadd.f32 %v674, %v675
  %679 = vadd.xlane.f32.xlu0 %v678
  %v680 = vpop.xlane.xlu0 %679
  %v681 = vadd.f32 %v676, %v677
  %682 = vadd.xlane.f32.xlu0 %v681
  %v683 = vpop.xlane.xlu0 %682
  %v684 = vmul.f32 %v680, %v311
  %v685 = vmul.f32 %v683, %v311
  %v686 = vadd.f32 %v684, 1e-05
  %v687 = vadd.f32 %v685, 1e-05
  %v688 = vrsqrt.pop %v686
  %v689 = vrsqrt.pop %v687
  %v690 = vmul.f32 %v670, %v688
  %v691 = vmul.f32 %v671, %v688
  %v692 = vmul.f32 %v672, %v689
  %v693 = vmul.f32 %v673, %v689
  %v695 = vlaneseq
  %v696 = vshrl.u32 %v695, 7
  %v697 = vsub.s32 0, %v696
  %v698 = vrot.slane %v660, %v697
  %v699 = vlaneseq
  %v700 = vshrl.u32 %v699, 7
  %v701 = vsub.s32 1, %v700
  %v702 = vrot.slane %v660, %v701
  %v705 = vmul.f32 %v690, %v698
  %v706 = vmul.f32 %v691, %v702
  %v707 = vmul.f32 %v692, %v698
  %v708 = vmul.f32 %v693, %v702
  %v710 = vlaneseq
  %v711 = vshrl.u32 %v710, 7
  %v712 = vsub.s32 0, %v711
  %v713 = vrot.slane %v661, %v712
  %v714 = vlaneseq
  %v715 = vshrl.u32 %v714, 7
  %v716 = vsub.s32 1, %v715
  %v717 = vrot.slane %v661, %v716
  %v720 = vadd.f32 %v705, %v713
  %v721 = vadd.f32 %v706, %v717
  %v722 = vadd.f32 %v707, %v713
  %v723 = vadd.f32 %v708, %v717
  %724 = vst [vmem:[%s12] sm:$0xff] %v720
  %725 = vst [vmem:[%s12 + $0x8] sm:$0xff] %v721
  %726 = vst [vmem:[%s12 + $0x10] sm:$0xff] %v722
  %727 = vst [vmem:[%s12 + $0x18] sm:$0xff] %v723
  // Predicated region
  $region50: #{trans_audio_forward.10} parent=0 // pred_check
    _
  $region51: #{trans_audio_forward.10} parent=0 // pred_check_branch
    %729 = sbr.rel (0) target = $region53
  $region52: #{trans_audio_forward.10} parent=0 // pred_region
    _
  $region53: #{trans_audio_forward.10} parent=0 // pred_fallthru
    _
  // Predicated region
  $region54: #{trans_audio_forward.10} parent=0 // pred_check
    _
  $region55: #{trans_audio_forward.10} parent=0 // pred_check_branch
    %731 = sbr.rel (0) target = $region57
  $region56: #{trans_audio_forward.10} parent=0 // pred_region
    _
  $region57: #{trans_audio_forward.10} parent=0 // pred_fallthru
    _

</llo_original>
